<compile_context>
chip_gen: v7x
topology: tpu7x:2x2x1
jax: 0.10.0
libtpu: 0.0.40
codegen_flags: <defaults>
</compile_context>

<pallas_src>
import functools
import math

import jax
import jax.numpy as jnp
from jax.experimental import pallas as pl
from jax.experimental.pallas import tpu as pltpu


# ---------------------------------------------------------------------------
# kernel
# ---------------------------------------------------------------------------
def _attnpool_kernel(x_ref, pos0_ref, poshw_ref, wq_ref, bq_ref,
                     wkv_ref, bkv_ref, wc_ref, bc_ref, sch_ref, shc_ref,
                     o_ref, *, num_heads, channel_major, flatten_out,
                     mxu_dtype, approx_recip):
    """One batch chunk of AttentionPool2d (the module only uses the mean-token
    query, so per-head logits are [1, hw+1] instead of [hw+1, hw+1]).

    channel_major=True : x_ref is [bb, c, hw] (transposed in-kernel on the XLU)
    channel_major=False: x_ref is [bb, hw, c] (pre-transposed by the wrapper)

    Tail grid step: batch rows past the real batch contain garbage, but every
    op here is row-wise per batch so they never contaminate valid rows; the
    wrapper slices them off.
    """
    nh = num_heads

    if channel_major:
        bb, c, hw = x_ref.shape
        x = x_ref[...]                                            # [bb, c, hw]
        x0 = jnp.mean(x, axis=-1) + pos0_ref[...]                 # lane reduce
        # add pos (channel-major), then one in-kernel XLU transpose
        xp = jnp.swapaxes(x + poshw_ref[...][None], 1, 2)         # [bb, hw, c]
    else:
        bb, hw, c = x_ref.shape
        x = x_ref[...]                                            # [bb, hw, c]
        x0 = jnp.mean(x, axis=1) + pos0_ref[...]
        xp = x + poshw_ref[...][None]

    # ---- K/V projection for the spatial tokens: one dense MXU matmul -------
    wkv = wkv_ref[...]
    kv = jnp.dot(xp.reshape(bb * hw, c).astype(mxu_dtype), wkv,
                 preferred_element_type=jnp.float32) + bkv_ref[...]
    k_hw = kv[:, :c].reshape(bb, hw, c)
    v_hw = kv[:, c:].reshape(bb, hw, c)

    # ---- mean token (the only query): q / k / v rows ------------------------
    x0m = x0.astype(mxu_dtype)
    q0 = jnp.dot(x0m, wq_ref[...],              # 1/sqrt(ch) folded into wq/bq
                 preferred_element_type=jnp.float32) + bq_ref[...]
    kv0 = jnp.dot(x0m, wkv, preferred_element_type=jnp.float32) + bkv_ref[...]
    k0, v0 = kv0[:, :c], kv0[:, c:]

    # ---- per-head logits for token 0 (softmax math stays f32) ---------------
    s_ch = sch_ref[...]                                           # [c, nh]
    s_hc = shc_ref[...]                                           # [nh, c]
    qk = (q0[:, None, :] * k_hw).reshape(bb * hw, c)              # f32, VPU
    logit_hw = jnp.dot(qk, s_ch, preferred_element_type=jnp.float32)
    logit_0 = jnp.dot(q0 * k0, s_ch, preferred_element_type=jnp.float32)

    if channel_major:
        # lane-dense softmax: hw on lanes, heads on sublanes
        lg = jnp.swapaxes(logit_hw.reshape(bb, hw, nh), 1, 2)     # [bb, nh, hw]
        m = jnp.maximum(jnp.max(lg, axis=-1), logit_0)            # [bb, nh]
        e_hw = jnp.exp(lg - m[:, :, None])
        e_0 = jnp.exp(logit_0 - m)
        inv = pl.reciprocal(jnp.sum(e_hw, axis=-1) + e_0, approx=approx_recip)
        w_tm = jnp.swapaxes(e_hw * inv[:, :, None], 1, 2).reshape(bb * hw, nh)
    else:
        lg = logit_hw.reshape(bb, hw, nh)                         # [bb, hw, nh]
        m = jnp.maximum(jnp.max(lg, axis=1), logit_0)
        e_hw = jnp.exp(lg - m[:, None, :])
        e_0 = jnp.exp(logit_0 - m)
        inv = pl.reciprocal(jnp.sum(e_hw, axis=1) + e_0, approx=approx_recip)
        w_tm = (e_hw * inv[:, None, :]).reshape(bb * hw, nh)
    w_0 = e_0 * inv

    # ---- broadcast per-head weights to channel width, weighted value sum ----
    wexp_hw = jnp.dot(w_tm, s_hc,
                      preferred_element_type=jnp.float32).reshape(bb, hw, c)
    wexp_0 = jnp.dot(w_0, s_hc, preferred_element_type=jnp.float32)
    a0 = jnp.sum(wexp_hw * v_hw, axis=1) + wexp_0 * v0            # [bb, c]

    # ---- output projection + store -------------------------------------------
    res = jnp.dot(a0.astype(mxu_dtype), wc_ref[...],
                  preferred_element_type=jnp.float32) + bc_ref[...]
    if flatten_out:
        o_ref[...] = res.reshape(1, -1).astype(o_ref.dtype)   # lane-dense slab
    else:
        o_ref[...] = res.astype(o_ref.dtype)


# ---------------------------------------------------------------------------
# wrapper
# ---------------------------------------------------------------------------
def _round_up(x, m):
    return ((x + m - 1) // m) * m


def _vmem_limit_bytes():
    # v5e/v6e: 128 MiB physical VMEM -> request 64 MiB scoped.
    # v7x:      64 MiB physical      -> request 32 MiB scoped.
    try:
        phys = pltpu.get_tpu_info().vmem_capacity_bytes
    except Exception:
        phys = 64 * 1024 * 1024
    return min(phys // 2, 64 * 1024 * 1024)


def _pick_bb(b, hw, c, budget_bytes):
    """Batch-chunk size from a VMEM budget.

    ~10 live f32 copies of a [bb, hw, c] tile: the double-buffered x block,
    xp, kv (counts as 2), qk, wexp, plus slack for e/w and layout temps.
    """
    per_row = 10 * hw * c * 4
    bb = max(8, budget_bytes // max(per_row, 1))
    bb = min(bb, 128)
    if b >= 16:
        # keep >= 2 grid steps so ("parallel",) can shard batch chunks across
        # both v7x TensorCores
        bb = min(bb, _round_up((b + 1) // 2, 8))
    bb = min(bb, _round_up(b, 8))
    bb = max(8, (bb // 8) * 8)          # sublane-dense
    return min(bb, b) if b < 8 else int(bb)


def attention_pool2d(x, pos_emb, w_qkv, b_qkv, w_c, b_c, num_heads,
                     *, mxu_dtype=jnp.bfloat16, approx_recip=True):
    """x: [b, c, H, W] NCHW.  pos_emb: [c, H*W+1].  w_qkv: [3c, c].  w_c: [out, c]."""
    b, c, H, W = x.shape
    hw = H * W
    out_dim = w_c.shape[0]
    nh = num_heads
    ch = c // nh
    scale2 = 1.0 / math.sqrt(ch)        # = (ch**-0.25)**2, applied to q only
    assert pos_emb.shape == (c, hw + 1)

    # channel-major sequence view: a pure reshape, no HBM transpose
    x_cm = x.reshape(b, c, hw)
    pos0 = pos_emb[:, 0].reshape(1, c).astype(jnp.float32)
    pos_hw_cm = pos_emb[:, 1:].astype(jnp.float32)                # [c, hw]

    # weights: transpose for [row, col]-major dots, fold the q scale, cast for MXU
    wq = (w_qkv[:c].T * scale2).astype(mxu_dtype)                 # [c, c]
    bq = (b_qkv[:c] * scale2).reshape(1, c).astype(jnp.float32)
    wkv = w_qkv[c:].T.astype(mxu_dtype)                           # [c, 2c]
    bkv = b_qkv[c:].reshape(1, 2 * c).astype(jnp.float32)
    wc = w_c.T.astype(mxu_dtype)                                  # [c, out_dim]
    bc = b_c.reshape(1, out_dim).astype(jnp.float32)

    # constant head-segment selector matrices (built once, DMA'd once)
    head_of = jnp.arange(c, dtype=jnp.int32) // ch
    s_ch = (head_of[:, None] ==
            jnp.arange(nh, dtype=jnp.int32)[None, :]).astype(jnp.float32)
    s_hc = s_ch.T

    vmem_limit = _vmem_limit_bytes()
    bb = _pick_bb(b, hw, c, vmem_limit // 2)
    nblk = pl.cdiv(b, bb)

    def build(channel_major):
        flatten = channel_major and (out_dim % 128 != 0)
        kern = functools.partial(
            _attnpool_kernel, num_heads=nh, channel_major=channel_major,
            flatten_out=flatten, mxu_dtype=mxu_dtype, approx_recip=approx_recip)

        if channel_major:
            x_in = x_cm
            x_spec = pl.BlockSpec((bb, c, hw), lambda i: (i, 0, 0))
            poshw_in = pos_hw_cm
            poshw_spec = pl.BlockSpec((c, hw), lambda i: (0, 0))
        else:
            # fallback only: pre-transpose in XLA (extra HBM pass)
            x_in = jnp.swapaxes(x_cm, 1, 2)
            x_spec = pl.BlockSpec((bb, hw, c), lambda i: (i, 0, 0))
            poshw_in = pos_hw_cm.T
            poshw_spec = pl.BlockSpec((hw, c), lambda i: (0, 0))

        if flatten:
            out_shape = jax.ShapeDtypeStruct((nblk, bb * out_dim), jnp.float32)
            out_spec = pl.BlockSpec((1, bb * out_dim), lambda i: (i, 0))
        else:
            out_shape = jax.ShapeDtypeStruct((nblk * bb, out_dim), jnp.float32)
            out_spec = pl.BlockSpec((bb, out_dim), lambda i: (i, 0))

        fn = pl.pallas_call(
            kern,
            out_shape=out_shape,
            grid_spec=pltpu.PrefetchScalarGridSpec(
                num_scalar_prefetch=0,
                grid=(nblk,),
                in_specs=[
                    x_spec,
                    pl.BlockSpec((1, c), lambda i: (0, 0)),          # pos0
                    poshw_spec,                                       # pos_hw
                    pl.BlockSpec((c, c), lambda i: (0, 0)),          # wq
                    pl.BlockSpec((1, c), lambda i: (0, 0)),          # bq
                    pl.BlockSpec((c, 2 * c), lambda i: (0, 0)),      # wkv
                    pl.BlockSpec((1, 2 * c), lambda i: (0, 0)),      # bkv
                    pl.BlockSpec((c, out_dim), lambda i: (0, 0)),    # wc
                    pl.BlockSpec((1, out_dim), lambda i: (0, 0)),    # bc
                    pl.BlockSpec((c, nh), lambda i: (0, 0)),         # s_ch
                    pl.BlockSpec((nh, c), lambda i: (0, 0)),         # s_hc
                ],
                out_specs=out_spec),
            compiler_params=pltpu.CompilerParams(
                dimension_semantics=("parallel",),
                vmem_limit_bytes=int(vmem_limit)),
        )(x_in, pos0, poshw_in, wq, bq, wkv, bkv, wc, bc, s_ch, s_hc)

        if flatten:
            return fn.reshape(nblk * bb, out_dim)[:b]
        return fn[:b]

    try:
        # primary: channel-major input (no wrapper HBM transpose), lane-dense
        # softmax and output slab — needs Mosaic support for 3-D minor-dim
        # transposes / in-kernel reshapes.
        return jax.block_until_ready(build(channel_major=True))
    except Exception:
        # portability fallback (v2-equivalent layout): wrapper-side transpose,
        # token-major softmax, plain (bb, out_dim) store.
        return build(channel_major=False)


# ---------------------------------------------------------------------------
# pure-JAX reference (mirrors the PyTorch forward) for verification
# ---------------------------------------------------------------------------
def attention_pool2d_ref(x, pos_emb, w_qkv, b_qkv, w_c, b_c, num_heads):
    b, c, H, W = x.shape
    xr = x.reshape(b, c, -1)
    xr = jnp.concatenate([xr.mean(axis=-1, keepdims=True), xr], axis=-1)
    xr = xr + pos_emb[None, :, :]
    qkv = jnp.einsum('oc,bct->bot', w_qkv, xr) + b_qkv[None, :, None]
    bs, width, length = qkv.shape
    ch = width // (3 * num_heads)
    q, k, v = jnp.split(qkv, 3, axis=1)
    scale = 1.0 / math.sqrt(math.sqrt(ch))
    qh = (q * scale).reshape(bs * num_heads, ch, length)
    kh = (k * scale).reshape(bs * num_heads, ch, length)
    vh = v.reshape(bs * num_heads, ch, length)
    w = jnp.einsum('bct,bcs->bts', qh, kh)
    w = jax.nn.softmax(w, axis=-1)
    a = jnp.einsum('bts,bcs->bct', w, vh).reshape(bs, -1, length)
    out = jnp.einsum('oc,bct->bot', w_c, a) + b_c[None, :, None]
    return out[:, :, 0]


if __name__ == "__main__":
    # module config: spacial_dim=4, embed_dim=32, num_heads_channels=8, output_dim=16
    batch, embed_dim, spacial_dim = 2, 32, 4
    num_heads_channels, output_dim = 8, 16
    num_heads = embed_dim // num_heads_channels
    seq = spacial_dim ** 2 + 1

    key = jax.random.PRNGKey(0)
    kx, kp, kw1, kb1, kw2, kb2 = jax.random.split(key, 6)

    x = jax.random.normal(kx, (batch, embed_dim, spacial_dim, spacial_dim),
                          dtype=jnp.float32)
    pos_emb = jax.random.normal(kp, (embed_dim, seq), jnp.float32) / embed_dim ** 0.5
    w_qkv = jax.random.normal(kw1, (3 * embed_dim, embed_dim), jnp.float32) * 0.05
    b_qkv = jax.random.normal(kb1, (3 * embed_dim,), jnp.float32) * 0.05
    w_c = jax.random.normal(kw2, (output_dim, embed_dim), jnp.float32) * 0.05
    b_c = jax.random.normal(kb2, (output_dim,), jnp.float32) * 0.05

    ref = jax.block_until_ready(
        attention_pool2d_ref(x, pos_emb, w_qkv, b_qkv, w_c, b_c, num_heads))

    # tight check: f32 MXU operands, exact reciprocal
    out_f32 = jax.block_until_ready(attention_pool2d(
        x, pos_emb, w_qkv, b_qkv, w_c, b_c, num_heads,
        mxu_dtype=jnp.float32, approx_recip=False))
    assert out_f32.shape == (batch, output_dim)
    assert jnp.allclose(out_f32, ref, atol=1e-4, rtol=1e-4), (
        f"f32 mismatch: max abs diff {jnp.max(jnp.abs(out_f32 - ref))}")

    # production path: bf16 MXU operands + approx EUP reciprocal (looser tol)
    out_bf16 = jax.block_until_ready(attention_pool2d(
        x, pos_emb, w_qkv, b_qkv, w_c, b_c, num_heads))
    assert out_bf16.shape == (batch, output_dim)
    assert jnp.allclose(out_bf16, ref, atol=2e-2, rtol=2e-2), (
        f"bf16 mismatch: max abs diff {jnp.max(jnp.abs(out_bf16 - ref))}")

    print("KERNEL_OK")
</pallas_src>

<mosaic_0001>
module attributes {stable_mosaic.version = 11 : i64} {
  func.func @_attnpool_kernel(%arg0: i32, %arg1: memref<2x32x16xf32, #tpu.memory_space<vmem>>, %arg2: memref<1x32xf32, #tpu.memory_space<vmem>>, %arg3: memref<32x16xf32, #tpu.memory_space<vmem>>, %arg4: memref<32x32xf32, #tpu.memory_space<vmem>>, %arg5: memref<1x32xf32, #tpu.memory_space<vmem>>, %arg6: memref<32x64xf32, #tpu.memory_space<vmem>>, %arg7: memref<1x64xf32, #tpu.memory_space<vmem>>, %arg8: memref<32x16xf32, #tpu.memory_space<vmem>>, %arg9: memref<1x16xf32, #tpu.memory_space<vmem>>, %arg10: memref<32x4xf32, #tpu.memory_space<vmem>>, %arg11: memref<4x32xf32, #tpu.memory_space<vmem>>, %arg12: memref<1x32xf32, #tpu.memory_space<vmem>>) attributes {dimension_semantics = [#tpu.dimension_semantics<parallel>], iteration_bounds = array<i64: 1>, scalar_prefetch = 0 : i64, scratch_operands = 0 : i64, tpu.core_type = #tpu.core_type<tc>, window_params = [{transform_indices = @transform_0, window_bounds = array<i64: 2, 32, 16>}, {pipeline_mode = #tpu.pipeline_mode<synchronous>, transform_indices = @transform_1, window_bounds = array<i64: 1, 32>}, {pipeline_mode = #tpu.pipeline_mode<synchronous>, transform_indices = @transform_2, window_bounds = array<i64: 32, 16>}, {pipeline_mode = #tpu.pipeline_mode<synchronous>, transform_indices = @transform_3, window_bounds = array<i64: 32, 32>}, {pipeline_mode = #tpu.pipeline_mode<synchronous>, transform_indices = @transform_4, window_bounds = array<i64: 1, 32>}, {pipeline_mode = #tpu.pipeline_mode<synchronous>, transform_indices = @transform_5, window_bounds = array<i64: 32, 64>}, {pipeline_mode = #tpu.pipeline_mode<synchronous>, transform_indices = @transform_6, window_bounds = array<i64: 1, 64>}, {pipeline_mode = #tpu.pipeline_mode<synchronous>, transform_indices = @transform_7, window_bounds = array<i64: 32, 16>}, {pipeline_mode = #tpu.pipeline_mode<synchronous>, transform_indices = @transform_8, window_bounds = array<i64: 1, 16>}, {pipeline_mode = #tpu.pipeline_mode<synchronous>, transform_indices = @transform_9, window_bounds = array<i64: 32, 4>}, {pipeline_mode = #tpu.pipeline_mode<synchronous>, transform_indices = @transform_10, window_bounds = array<i64: 4, 32>}, {transform_indices = @transform_11, window_bounds = array<i64: 1, 32>}]} {
    %c0 = arith.constant 0 : index
    %c0_0 = arith.constant 0 : index
    %c0_1 = arith.constant 0 : index
    %0 = vector.load %arg1[%c0, %c0_0, %c0_1] : memref<2x32x16xf32, #tpu.memory_space<vmem>>, vector<2x32x16xf32>
    %cst = arith.constant dense<0.000000e+00> : vector<2x32xf32>
    %1 = vector.multi_reduction <add>, %0, %cst [2] : vector<2x32x16xf32> to vector<2x32xf32>
    %cst_2 = arith.constant 1.600000e+01 : f32
    %2 = vector.broadcast %cst_2 : f32 to vector<2x32xf32>
    %3 = arith.divf %1, %2 : vector<2x32xf32>
    %c0_3 = arith.constant 0 : index
    %c0_4 = arith.constant 0 : index
    %4 = vector.load %arg2[%c0_3, %c0_4] : memref<1x32xf32, #tpu.memory_space<vmem>>, vector<1x32xf32>
    %5 = vector.broadcast %4 : vector<1x32xf32> to vector<2x32xf32>
    %6 = arith.addf %3, %5 : vector<2x32xf32>
    %c0_5 = arith.constant 0 : index
    %c0_6 = arith.constant 0 : index
    %7 = vector.load %arg3[%c0_5, %c0_6] : memref<32x16xf32, #tpu.memory_space<vmem>>, vector<32x16xf32>
    %8 = vector.shape_cast %7 : vector<32x16xf32> to vector<1x32x16xf32>
    %9 = vector.broadcast %8 : vector<1x32x16xf32> to vector<2x32x16xf32>
    %10 = arith.addf %0, %9 : vector<2x32x16xf32>
    %11 = tpu.transpose %10, [0, 2, 1] : vector<2x32x16xf32> -> vector<2x16x32xf32>
    %c0_7 = arith.constant 0 : index
    %c0_8 = arith.constant 0 : index
    %12 = vector.load %arg6[%c0_7, %c0_8] : memref<32x64xf32, #tpu.memory_space<vmem>>, vector<32x64xf32>
    %13 = vector.shape_cast %11 : vector<2x16x32xf32> to vector<32x32xf32>
    %cst_9 = arith.constant dense<0.000000e+00> : vector<32x64xf32>
    %14 = tpu.matmul %13, %12, %cst_9 {dimension_numbers = #tpu.dot_dimension_numbers<[1], [0], [0], [1], [0, 0, 1, 1], [], []>} : vector<32x32xf32>, vector<32x64xf32>, vector<32x64xf32> -> vector<32x64xf32>
    %c0_10 = arith.constant 0 : index
    %c0_11 = arith.constant 0 : index
    %15 = vector.load %arg7[%c0_10, %c0_11] : memref<1x64xf32, #tpu.memory_space<vmem>>, vector<1x64xf32>
    %16 = vector.broadcast %15 : vector<1x64xf32> to vector<32x64xf32>
    %17 = arith.addf %14, %16 : vector<32x64xf32>
    %18 = vector.extract_strided_slice %17 {offsets = [0, 0], sizes = [32, 32], strides = [1, 1]} : vector<32x64xf32> to vector<32x32xf32>
    %19 = vector.shape_cast %18 : vector<32x32xf32> to vector<2x16x32xf32>
    %20 = vector.extract_strided_slice %17 {offsets = [0, 32], sizes = [32, 32], strides = [1, 1]} : vector<32x64xf32> to vector<32x32xf32>
    %21 = vector.shape_cast %20 : vector<32x32xf32> to vector<2x16x32xf32>
    %c0_12 = arith.constant 0 : index
    %c0_13 = arith.constant 0 : index
    %22 = vector.load %arg4[%c0_12, %c0_13] : memref<32x32xf32, #tpu.memory_space<vmem>>, vector<32x32xf32>
    %cst_14 = arith.constant dense<0.000000e+00> : vector<2x32xf32>
    %23 = tpu.matmul %6, %22, %cst_14 {dimension_numbers = #tpu.dot_dimension_numbers<[1], [0], [0], [1], [0, 0, 1, 1], [], []>} : vector<2x32xf32>, vector<32x32xf32>, vector<2x32xf32> -> vector<2x32xf32>
    %c0_15 = arith.constant 0 : index
    %c0_16 = arith.constant 0 : index
    %24 = vector.load %arg5[%c0_15, %c0_16] : memref<1x32xf32, #tpu.memory_space<vmem>>, vector<1x32xf32>
    %25 = vector.broadcast %24 : vector<1x32xf32> to vector<2x32xf32>
    %26 = arith.addf %23, %25 : vector<2x32xf32>
    %cst_17 = arith.constant dense<0.000000e+00> : vector<2x64xf32>
    %27 = tpu.matmul %6, %12, %cst_17 {dimension_numbers = #tpu.dot_dimension_numbers<[1], [0], [0], [1], [0, 0, 1, 1], [], []>} : vector<2x32xf32>, vector<32x64xf32>, vector<2x64xf32> -> vector<2x64xf32>
    %c0_18 = arith.constant 0 : index
    %c0_19 = arith.constant 0 : index
    %28 = vector.load %arg7[%c0_18, %c0_19] : memref<1x64xf32, #tpu.memory_space<vmem>>, vector<1x64xf32>
    %29 = vector.broadcast %28 : vector<1x64xf32> to vector<2x64xf32>
    %30 = arith.addf %27, %29 : vector<2x64xf32>
    %31 = vector.extract_strided_slice %30 {offsets = [0, 0], sizes = [2, 32], strides = [1, 1]} : vector<2x64xf32> to vector<2x32xf32>
    %32 = vector.extract_strided_slice %30 {offsets = [0, 32], sizes = [2, 32], strides = [1, 1]} : vector<2x64xf32> to vector<2x32xf32>
    %c0_20 = arith.constant 0 : index
    %c0_21 = arith.constant 0 : index
    %33 = vector.load %arg10[%c0_20, %c0_21] : memref<32x4xf32, #tpu.memory_space<vmem>>, vector<32x4xf32>
    %c0_22 = arith.constant 0 : index
    %c0_23 = arith.constant 0 : index
    %34 = vector.load %arg11[%c0_22, %c0_23] : memref<4x32xf32, #tpu.memory_space<vmem>>, vector<4x32xf32>
    %35 = vector.shape_cast %26 : vector<2x32xf32> to vector<2x1x32xf32>
    %36 = vector.broadcast %35 : vector<2x1x32xf32> to vector<2x16x32xf32>
    %37 = arith.mulf %36, %19 : vector<2x16x32xf32>
    %38 = vector.shape_cast %37 : vector<2x16x32xf32> to vector<32x32xf32>
    %cst_24 = arith.constant dense<0.000000e+00> : vector<32x4xf32>
    %39 = tpu.matmul %38, %33, %cst_24 {dimension_numbers = #tpu.dot_dimension_numbers<[1], [0], [0], [1], [0, 0, 1, 1], [], []>} : vector<32x32xf32>, vector<32x4xf32>, vector<32x4xf32> -> vector<32x4xf32>
    %40 = arith.mulf %26, %31 : vector<2x32xf32>
    %cst_25 = arith.constant dense<0.000000e+00> : vector<2x4xf32>
    %41 = tpu.matmul %40, %33, %cst_25 {dimension_numbers = #tpu.dot_dimension_numbers<[1], [0], [0], [1], [0, 0, 1, 1], [], []>} : vector<2x32xf32>, vector<32x4xf32>, vector<2x4xf32> -> vector<2x4xf32>
    %42 = vector.shape_cast %39 : vector<32x4xf32> to vector<2x16x4xf32>
    %43 = tpu.transpose %42, [0, 2, 1] : vector<2x16x4xf32> -> vector<2x4x16xf32>
    %cst_26 = arith.constant dense<0xFF800000> : vector<2x4xf32>
    %44 = vector.multi_reduction <maximumf>, %43, %cst_26 [2] : vector<2x4x16xf32> to vector<2x4xf32>
    %45 = arith.maximumf %44, %41 : vector<2x4xf32>
    %46 = vector.shape_cast %45 : vector<2x4xf32> to vector<2x4x1xf32>
    %47 = vector.broadcast %46 : vector<2x4x1xf32> to vector<2x4x16xf32>
    %48 = arith.subf %43, %47 : vector<2x4x16xf32>
    %49 = math.exp %48 : vector<2x4x16xf32>
    %50 = arith.subf %41, %45 : vector<2x4xf32>
    %51 = math.exp %50 : vector<2x4xf32>
    %cst_27 = arith.constant dense<0.000000e+00> : vector<2x4xf32>
    %52 = vector.multi_reduction <add>, %49, %cst_27 [2] : vector<2x4x16xf32> to vector<2x4xf32>
    %53 = arith.addf %52, %51 : vector<2x4xf32>
    %54 = tpu.reciprocal %53 : vector<2x4xf32> -> vector<2x4xf32>
    %55 = vector.shape_cast %54 : vector<2x4xf32> to vector<2x4x1xf32>
    %56 = vector.broadcast %55 : vector<2x4x1xf32> to vector<2x4x16xf32>
    %57 = arith.mulf %49, %56 : vector<2x4x16xf32>
    %58 = tpu.transpose %57, [0, 2, 1] : vector<2x4x16xf32> -> vector<2x16x4xf32>
    %59 = vector.shape_cast %58 : vector<2x16x4xf32> to vector<32x4xf32>
    %60 = arith.mulf %51, %54 : vector<2x4xf32>
    %cst_28 = arith.constant dense<0.000000e+00> : vector<32x32xf32>
    %61 = tpu.matmul %59, %34, %cst_28 {dimension_numbers = #tpu.dot_dimension_numbers<[1], [0], [0], [1], [0, 0, 1, 1], [], []>} : vector<32x4xf32>, vector<4x32xf32>, vector<32x32xf32> -> vector<32x32xf32>
    %62 = vector.shape_cast %61 : vector<32x32xf32> to vector<2x16x32xf32>
    %cst_29 = arith.constant dense<0.000000e+00> : vector<2x32xf32>
    %63 = tpu.matmul %60, %34, %cst_29 {dimension_numbers = #tpu.dot_dimension_numbers<[1], [0], [0], [1], [0, 0, 1, 1], [], []>} : vector<2x4xf32>, vector<4x32xf32>, vector<2x32xf32> -> vector<2x32xf32>
    %64 = arith.mulf %62, %21 : vector<2x16x32xf32>
    %cst_30 = arith.constant dense<0.000000e+00> : vector<2x32xf32>
    %65 = vector.multi_reduction <add>, %64, %cst_30 [1] : vector<2x16x32xf32> to vector<2x32xf32>
    %66 = arith.mulf %63, %32 : vector<2x32xf32>
    %67 = arith.addf %65, %66 : vector<2x32xf32>
    %c0_31 = arith.constant 0 : index
    %c0_32 = arith.constant 0 : index
    %68 = vector.load %arg8[%c0_31, %c0_32] : memref<32x16xf32, #tpu.memory_space<vmem>>, vector<32x16xf32>
    %cst_33 = arith.constant dense<0.000000e+00> : vector<2x16xf32>
    %69 = tpu.matmul %67, %68, %cst_33 {dimension_numbers = #tpu.dot_dimension_numbers<[1], [0], [0], [1], [0, 0, 1, 1], [], []>} : vector<2x32xf32>, vector<32x16xf32>, vector<2x16xf32> -> vector<2x16xf32>
    %c0_34 = arith.constant 0 : index
    %c0_35 = arith.constant 0 : index
    %70 = vector.load %arg9[%c0_34, %c0_35] : memref<1x16xf32, #tpu.memory_space<vmem>>, vector<1x16xf32>
    %71 = vector.broadcast %70 : vector<1x16xf32> to vector<2x16xf32>
    %72 = arith.addf %69, %71 : vector<2x16xf32>
    %73 = vector.shape_cast %72 : vector<2x16xf32> to vector<1x32xf32>
    %c0_36 = arith.constant 0 : index
    %c0_37 = arith.constant 0 : index
    %74 = vector.load %arg12[%c0_36, %c0_37] : memref<1x32xf32, #tpu.memory_space<vmem>>, vector<1x32xf32>
    tpu.vector_store %arg12[%c0_36, %c0_37], %73 {strides = array<i32>} : memref<1x32xf32, #tpu.memory_space<vmem>>, vector<1x32xf32>,
    return
  }
  func.func @transform_0(%arg0: i32) -> (i32, i32, i32) {
    %c0_i32 = arith.constant 0 : i32
    %c0_i32_0 = arith.constant 0 : i32
    %c0_i32_1 = arith.constant 0 : i32
    return %arg0, %c0_i32, %c0_i32_0 : i32, i32, i32
  }
  func.func @transform_1(%arg0: i32) -> (i32, i32) {
    %c0_i32 = arith.constant 0 : i32
    %c0_i32_0 = arith.constant 0 : i32
    %c0_i32_1 = arith.constant 0 : i32
    return %c0_i32, %c0_i32_0 : i32, i32
  }
  func.func @transform_2(%arg0: i32) -> (i32, i32) {
    %c0_i32 = arith.constant 0 : i32
    %c0_i32_0 = arith.constant 0 : i32
    %c0_i32_1 = arith.constant 0 : i32
    return %c0_i32, %c0_i32_0 : i32, i32
  }
  func.func @transform_3(%arg0: i32) -> (i32, i32) {
    %c0_i32 = arith.constant 0 : i32
    %c0_i32_0 = arith.constant 0 : i32
    %c0_i32_1 = arith.constant 0 : i32
    return %c0_i32, %c0_i32_0 : i32, i32
  }
  func.func @transform_4(%arg0: i32) -> (i32, i32) {
    %c0_i32 = arith.constant 0 : i32
    %c0_i32_0 = arith.constant 0 : i32
    %c0_i32_1 = arith.constant 0 : i32
    return %c0_i32, %c0_i32_0 : i32, i32
  }
  func.func @transform_5(%arg0: i32) -> (i32, i32) {
    %c0_i32 = arith.constant 0 : i32
    %c0_i32_0 = arith.constant 0 : i32
    %c0_i32_1 = arith.constant 0 : i32
    return %c0_i32, %c0_i32_0 : i32, i32
  }
  func.func @transform_6(%arg0: i32) -> (i32, i32) {
    %c0_i32 = arith.constant 0 : i32
    %c0_i32_0 = arith.constant 0 : i32
    %c0_i32_1 = arith.constant 0 : i32
    return %c0_i32, %c0_i32_0 : i32, i32
  }
  func.func @transform_7(%arg0: i32) -> (i32, i32) {
    %c0_i32 = arith.constant 0 : i32
    %c0_i32_0 = arith.constant 0 : i32
    %c0_i32_1 = arith.constant 0 : i32
    return %c0_i32, %c0_i32_0 : i32, i32
  }
  func.func @transform_8(%arg0: i32) -> (i32, i32) {
    %c0_i32 = arith.constant 0 : i32
    %c0_i32_0 = arith.constant 0 : i32
    %c0_i32_1 = arith.constant 0 : i32
    return %c0_i32, %c0_i32_0 : i32, i32
  }
  func.func @transform_9(%arg0: i32) -> (i32, i32) {
    %c0_i32 = arith.constant 0 : i32
    %c0_i32_0 = arith.constant 0 : i32
    %c0_i32_1 = arith.constant 0 : i32
    return %c0_i32, %c0_i32_0 : i32, i32
  }
  func.func @transform_10(%arg0: i32) -> (i32, i32) {
    %c0_i32 = arith.constant 0 : i32
    %c0_i32_0 = arith.constant 0 : i32
    %c0_i32_1 = arith.constant 0 : i32
    return %c0_i32, %c0_i32_0 : i32, i32
  }
  func.func @transform_11(%arg0: i32) -> (i32, i32) {
    %c0_i32 = arith.constant 0 : i32
    %c0_i32_0 = arith.constant 0 : i32
    return %arg0, %c0_i32 : i32, i32
  }
}

module attributes {stable_mosaic.version = 11 : i64} {
  func.func @_attnpool_kernel(%arg0: i32, %arg1: memref<2x16x32xf32, #tpu.memory_space<vmem>>, %arg2: memref<1x32xf32, #tpu.memory_space<vmem>>, %arg3: memref<16x32xf32, #tpu.memory_space<vmem>>, %arg4: memref<32x32xf32, #tpu.memory_space<vmem>>, %arg5: memref<1x32xf32, #tpu.memory_space<vmem>>, %arg6: memref<32x64xf32, #tpu.memory_space<vmem>>, %arg7: memref<1x64xf32, #tpu.memory_space<vmem>>, %arg8: memref<32x16xf32, #tpu.memory_space<vmem>>, %arg9: memref<1x16xf32, #tpu.memory_space<vmem>>, %arg10: memref<32x4xf32, #tpu.memory_space<vmem>>, %arg11: memref<4x32xf32, #tpu.memory_space<vmem>>, %arg12: memref<2x16xf32, #tpu.memory_space<vmem>>) attributes {dimension_semantics = [#tpu.dimension_semantics<parallel>], iteration_bounds = array<i64: 1>, scalar_prefetch = 0 : i64, scratch_operands = 0 : i64, tpu.core_type = #tpu.core_type<tc>, window_params = [{transform_indices = @transform_0, window_bounds = array<i64: 2, 16, 32>}, {pipeline_mode = #tpu.pipeline_mode<synchronous>, transform_indices = @transform_1, window_bounds = array<i64: 1, 32>}, {pipeline_mode = #tpu.pipeline_mode<synchronous>, transform_indices = @transform_2, window_bounds = array<i64: 16, 32>}, {pipeline_mode = #tpu.pipeline_mode<synchronous>, transform_indices = @transform_3, window_bounds = array<i64: 32, 32>}, {pipeline_mode = #tpu.pipeline_mode<synchronous>, transform_indices = @transform_4, window_bounds = array<i64: 1, 32>}, {pipeline_mode = #tpu.pipeline_mode<synchronous>, transform_indices = @transform_5, window_bounds = array<i64: 32, 64>}, {pipeline_mode = #tpu.pipeline_mode<synchronous>, transform_indices = @transform_6, window_bounds = array<i64: 1, 64>}, {pipeline_mode = #tpu.pipeline_mode<synchronous>, transform_indices = @transform_7, window_bounds = array<i64: 32, 16>}, {pipeline_mode = #tpu.pipeline_mode<synchronous>, transform_indices = @transform_8, window_bounds = array<i64: 1, 16>}, {pipeline_mode = #tpu.pipeline_mode<synchronous>, transform_indices = @transform_9, window_bounds = array<i64: 32, 4>}, {pipeline_mode = #tpu.pipeline_mode<synchronous>, transform_indices = @transform_10, window_bounds = array<i64: 4, 32>}, {transform_indices = @transform_11, window_bounds = array<i64: 2, 16>}]} {
    %c0 = arith.constant 0 : index
    %c0_0 = arith.constant 0 : index
    %c0_1 = arith.constant 0 : index
    %0 = vector.load %arg1[%c0, %c0_0, %c0_1] : memref<2x16x32xf32, #tpu.memory_space<vmem>>, vector<2x16x32xf32>
    %cst = arith.constant dense<0.000000e+00> : vector<2x32xf32>
    %1 = vector.multi_reduction <add>, %0, %cst [1] : vector<2x16x32xf32> to vector<2x32xf32>
    %cst_2 = arith.constant 1.600000e+01 : f32
    %2 = vector.broadcast %cst_2 : f32 to vector<2x32xf32>
    %3 = arith.divf %1, %2 : vector<2x32xf32>
    %c0_3 = arith.constant 0 : index
    %c0_4 = arith.constant 0 : index
    %4 = vector.load %arg2[%c0_3, %c0_4] : memref<1x32xf32, #tpu.memory_space<vmem>>, vector<1x32xf32>
    %5 = vector.broadcast %4 : vector<1x32xf32> to vector<2x32xf32>
    %6 = arith.addf %3, %5 : vector<2x32xf32>
    %c0_5 = arith.constant 0 : index
    %c0_6 = arith.constant 0 : index
    %7 = vector.load %arg3[%c0_5, %c0_6] : memref<16x32xf32, #tpu.memory_space<vmem>>, vector<16x32xf32>
    %8 = vector.shape_cast %7 : vector<16x32xf32> to vector<1x16x32xf32>
    %9 = vector.broadcast %8 : vector<1x16x32xf32> to vector<2x16x32xf32>
    %10 = arith.addf %0, %9 : vector<2x16x32xf32>
    %c0_7 = arith.constant 0 : index
    %c0_8 = arith.constant 0 : index
    %11 = vector.load %arg6[%c0_7, %c0_8] : memref<32x64xf32, #tpu.memory_space<vmem>>, vector<32x64xf32>
    %12 = vector.shape_cast %10 : vector<2x16x32xf32> to vector<32x32xf32>
    %cst_9 = arith.constant dense<0.000000e+00> : vector<32x64xf32>
    %13 = tpu.matmul %12, %11, %cst_9 {dimension_numbers = #tpu.dot_dimension_numbers<[1], [0], [0], [1], [0, 0, 1, 1], [], []>} : vector<32x32xf32>, vector<32x64xf32>, vector<32x64xf32> -> vector<32x64xf32>
    %c0_10 = arith.constant 0 : index
    %c0_11 = arith.constant 0 : index
    %14 = vector.load %arg7[%c0_10, %c0_11] : memref<1x64xf32, #tpu.memory_space<vmem>>, vector<1x64xf32>
    %15 = vector.broadcast %14 : vector<1x64xf32> to vector<32x64xf32>
    %16 = arith.addf %13, %15 : vector<32x64xf32>
    %17 = vector.extract_strided_slice %16 {offsets = [0, 0], sizes = [32, 32], strides = [1, 1]} : vector<32x64xf32> to vector<32x32xf32>
    %18 = vector.shape_cast %17 : vector<32x32xf32> to vector<2x16x32xf32>
    %19 = vector.extract_strided_slice %16 {offsets = [0, 32], sizes = [32, 32], strides = [1, 1]} : vector<32x64xf32> to vector<32x32xf32>
    %20 = vector.shape_cast %19 : vector<32x32xf32> to vector<2x16x32xf32>
    %c0_12 = arith.constant 0 : index
    %c0_13 = arith.constant 0 : index
    %21 = vector.load %arg4[%c0_12, %c0_13] : memref<32x32xf32, #tpu.memory_space<vmem>>, vector<32x32xf32>
    %cst_14 = arith.constant dense<0.000000e+00> : vector<2x32xf32>
    %22 = tpu.matmul %6, %21, %cst_14 {dimension_numbers = #tpu.dot_dimension_numbers<[1], [0], [0], [1], [0, 0, 1, 1], [], []>} : vector<2x32xf32>, vector<32x32xf32>, vector<2x32xf32> -> vector<2x32xf32>
    %c0_15 = arith.constant 0 : index
    %c0_16 = arith.constant 0 : index
    %23 = vector.load %arg5[%c0_15, %c0_16] : memref<1x32xf32, #tpu.memory_space<vmem>>, vector<1x32xf32>
    %24 = vector.broadcast %23 : vector<1x32xf32> to vector<2x32xf32>
    %25 = arith.addf %22, %24 : vector<2x32xf32>
    %cst_17 = arith.constant dense<0.000000e+00> : vector<2x64xf32>
    %26 = tpu.matmul %6, %11, %cst_17 {dimension_numbers = #tpu.dot_dimension_numbers<[1], [0], [0], [1], [0, 0, 1, 1], [], []>} : vector<2x32xf32>, vector<32x64xf32>, vector<2x64xf32> -> vector<2x64xf32>
    %c0_18 = arith.constant 0 : index
    %c0_19 = arith.constant 0 : index
    %27 = vector.load %arg7[%c0_18, %c0_19] : memref<1x64xf32, #tpu.memory_space<vmem>>, vector<1x64xf32>
    %28 = vector.broadcast %27 : vector<1x64xf32> to vector<2x64xf32>
    %29 = arith.addf %26, %28 : vector<2x64xf32>
    %30 = vector.extract_strided_slice %29 {offsets = [0, 0], sizes = [2, 32], strides = [1, 1]} : vector<2x64xf32> to vector<2x32xf32>
    %31 = vector.extract_strided_slice %29 {offsets = [0, 32], sizes = [2, 32], strides = [1, 1]} : vector<2x64xf32> to vector<2x32xf32>
    %c0_20 = arith.constant 0 : index
    %c0_21 = arith.constant 0 : index
    %32 = vector.load %arg10[%c0_20, %c0_21] : memref<32x4xf32, #tpu.memory_space<vmem>>, vector<32x4xf32>
    %c0_22 = arith.constant 0 : index
    %c0_23 = arith.constant 0 : index
    %33 = vector.load %arg11[%c0_22, %c0_23] : memref<4x32xf32, #tpu.memory_space<vmem>>, vector<4x32xf32>
    %34 = vector.shape_cast %25 : vector<2x32xf32> to vector<2x1x32xf32>
    %35 = vector.broadcast %34 : vector<2x1x32xf32> to vector<2x16x32xf32>
    %36 = arith.mulf %35, %18 : vector<2x16x32xf32>
    %37 = vector.shape_cast %36 : vector<2x16x32xf32> to vector<32x32xf32>
    %cst_24 = arith.constant dense<0.000000e+00> : vector<32x4xf32>
    %38 = tpu.matmul %37, %32, %cst_24 {dimension_numbers = #tpu.dot_dimension_numbers<[1], [0], [0], [1], [0, 0, 1, 1], [], []>} : vector<32x32xf32>, vector<32x4xf32>, vector<32x4xf32> -> vector<32x4xf32>
    %39 = arith.mulf %25, %30 : vector<2x32xf32>
    %cst_25 = arith.constant dense<0.000000e+00> : vector<2x4xf32>
    %40 = tpu.matmul %39, %32, %cst_25 {dimension_numbers = #tpu.dot_dimension_numbers<[1], [0], [0], [1], [0, 0, 1, 1], [], []>} : vector<2x32xf32>, vector<32x4xf32>, vector<2x4xf32> -> vector<2x4xf32>
    %41 = vector.shape_cast %38 : vector<32x4xf32> to vector<2x16x4xf32>
    %cst_26 = arith.constant dense<0xFF800000> : vector<2x4xf32>
    %42 = vector.multi_reduction <maximumf>, %41, %cst_26 [1] : vector<2x16x4xf32> to vector<2x4xf32>
    %43 = arith.maximumf %42, %40 : vector<2x4xf32>
    %44 = vector.shape_cast %43 : vector<2x4xf32> to vector<2x1x4xf32>
    %45 = vector.broadcast %44 : vector<2x1x4xf32> to vector<2x16x4xf32>
    %46 = arith.subf %41, %45 : vector<2x16x4xf32>
    %47 = math.exp %46 : vector<2x16x4xf32>
    %48 = arith.subf %40, %43 : vector<2x4xf32>
    %49 = math.exp %48 : vector<2x4xf32>
    %cst_27 = arith.constant dense<0.000000e+00> : vector<2x4xf32>
    %50 = vector.multi_reduction <add>, %47, %cst_27 [1] : vector<2x16x4xf32> to vector<2x4xf32>
    %51 = arith.addf %50, %49 : vector<2x4xf32>
    %52 = tpu.reciprocal %51 : vector<2x4xf32> -> vector<2x4xf32>
    %53 = vector.shape_cast %52 : vector<2x4xf32> to vector<2x1x4xf32>
    %54 = vector.broadcast %53 : vector<2x1x4xf32> to vector<2x16x4xf32>
    %55 = arith.mulf %47, %54 : vector<2x16x4xf32>
    %56 = vector.shape_cast %55 : vector<2x16x4xf32> to vector<32x4xf32>
    %57 = arith.mulf %49, %52 : vector<2x4xf32>
    %cst_28 = arith.constant dense<0.000000e+00> : vector<32x32xf32>
    %58 = tpu.matmul %56, %33, %cst_28 {dimension_numbers = #tpu.dot_dimension_numbers<[1], [0], [0], [1], [0, 0, 1, 1], [], []>} : vector<32x4xf32>, vector<4x32xf32>, vector<32x32xf32> -> vector<32x32xf32>
    %59 = vector.shape_cast %58 : vector<32x32xf32> to vector<2x16x32xf32>
    %cst_29 = arith.constant dense<0.000000e+00> : vector<2x32xf32>
    %60 = tpu.matmul %57, %33, %cst_29 {dimension_numbers = #tpu.dot_dimension_numbers<[1], [0], [0], [1], [0, 0, 1, 1], [], []>} : vector<2x4xf32>, vector<4x32xf32>, vector<2x32xf32> -> vector<2x32xf32>
    %61 = arith.mulf %59, %20 : vector<2x16x32xf32>
    %cst_30 = arith.constant dense<0.000000e+00> : vector<2x32xf32>
    %62 = vector.multi_reduction <add>, %61, %cst_30 [1] : vector<2x16x32xf32> to vector<2x32xf32>
    %63 = arith.mulf %60, %31 : vector<2x32xf32>
    %64 = arith.addf %62, %63 : vector<2x32xf32>
    %c0_31 = arith.constant 0 : index
    %c0_32 = arith.constant 0 : index
    %65 = vector.load %arg8[%c0_31, %c0_32] : memref<32x16xf32, #tpu.memory_space<vmem>>, vector<32x16xf32>
    %cst_33 = arith.constant dense<0.000000e+00> : vector<2x16xf32>
    %66 = tpu.matmul %64, %65, %cst_33 {dimension_numbers = #tpu.dot_dimension_numbers<[1], [0], [0], [1], [0, 0, 1, 1], [], []>} : vector<2x32xf32>, vector<32x16xf32>, vector<2x16xf32> -> vector<2x16xf32>
    %c0_34 = arith.constant 0 : index
    %c0_35 = arith.constant 0 : index
    %67 = vector.load %arg9[%c0_34, %c0_35] : memref<1x16xf32, #tpu.memory_space<vmem>>, vector<1x16xf32>
    %68 = vector.broadcast %67 : vector<1x16xf32> to vector<2x16xf32>
    %69 = arith.addf %66, %68 : vector<2x16xf32>
    %c0_36 = arith.constant 0 : index
    %c0_37 = arith.constant 0 : index
    %70 = vector.load %arg12[%c0_36, %c0_37] : memref<2x16xf32, #tpu.memory_space<vmem>>, vector<2x16xf32>
    tpu.vector_store %arg12[%c0_36, %c0_37], %69 {strides = array<i32>} : memref<2x16xf32, #tpu.memory_space<vmem>>, vector<2x16xf32>,
    return
  }
  func.func @transform_0(%arg0: i32) -> (i32, i32, i32) {
    %c0_i32 = arith.constant 0 : i32
    %c0_i32_0 = arith.constant 0 : i32
    %c0_i32_1 = arith.constant 0 : i32
    return %arg0, %c0_i32, %c0_i32_0 : i32, i32, i32
  }
  func.func @transform_1(%arg0: i32) -> (i32, i32) {
    %c0_i32 = arith.constant 0 : i32
    %c0_i32_0 = arith.constant 0 : i32
    %c0_i32_1 = arith.constant 0 : i32
    return %c0_i32, %c0_i32_0 : i32, i32
  }
  func.func @transform_2(%arg0: i32) -> (i32, i32) {
    %c0_i32 = arith.constant 0 : i32
    %c0_i32_0 = arith.constant 0 : i32
    %c0_i32_1 = arith.constant 0 : i32
    return %c0_i32, %c0_i32_0 : i32, i32
  }
  func.func @transform_3(%arg0: i32) -> (i32, i32) {
    %c0_i32 = arith.constant 0 : i32
    %c0_i32_0 = arith.constant 0 : i32
    %c0_i32_1 = arith.constant 0 : i32
    return %c0_i32, %c0_i32_0 : i32, i32
  }
  func.func @transform_4(%arg0: i32) -> (i32, i32) {
    %c0_i32 = arith.constant 0 : i32
    %c0_i32_0 = arith.constant 0 : i32
    %c0_i32_1 = arith.constant 0 : i32
    return %c0_i32, %c0_i32_0 : i32, i32
  }
  func.func @transform_5(%arg0: i32) -> (i32, i32) {
    %c0_i32 = arith.constant 0 : i32
    %c0_i32_0 = arith.constant 0 : i32
    %c0_i32_1 = arith.constant 0 : i32
    return %c0_i32, %c0_i32_0 : i32, i32
  }
  func.func @transform_6(%arg0: i32) -> (i32, i32) {
    %c0_i32 = arith.constant 0 : i32
    %c0_i32_0 = arith.constant 0 : i32
    %c0_i32_1 = arith.constant 0 : i32
    return %c0_i32, %c0_i32_0 : i32, i32
  }
  func.func @transform_7(%arg0: i32) -> (i32, i32) {
    %c0_i32 = arith.constant 0 : i32
    %c0_i32_0 = arith.constant 0 : i32
    %c0_i32_1 = arith.constant 0 : i32
    return %c0_i32, %c0_i32_0 : i32, i32
  }
  func.func @transform_8(%arg0: i32) -> (i32, i32) {
    %c0_i32 = arith.constant 0 : i32
    %c0_i32_0 = arith.constant 0 : i32
    %c0_i32_1 = arith.constant 0 : i32
    return %c0_i32, %c0_i32_0 : i32, i32
  }
  func.func @transform_9(%arg0: i32) -> (i32, i32) {
    %c0_i32 = arith.constant 0 : i32
    %c0_i32_0 = arith.constant 0 : i32
    %c0_i32_1 = arith.constant 0 : i32
    return %c0_i32, %c0_i32_0 : i32, i32
  }
  func.func @transform_10(%arg0: i32) -> (i32, i32) {
    %c0_i32 = arith.constant 0 : i32
    %c0_i32_0 = arith.constant 0 : i32
    %c0_i32_1 = arith.constant 0 : i32
    return %c0_i32, %c0_i32_0 : i32, i32
  }
  func.func @transform_11(%arg0: i32) -> (i32, i32) {
    %c0_i32 = arith.constant 0 : i32
    %c0_i32_0 = arith.constant 0 : i32
    return %arg0, %c0_i32 : i32, i32
  }
}

</mosaic_0001>

<llo_original>
// kernel: tpu_custom_call.1
$region0: #{tpu_custom_call.1}
  #allocation0 [shape = 'u32[]', space=smem, size = 0x4, offset = 0x4, fixed_abs, tag = 'smem constant byte address 0x4 - core index']
  #allocation1 [shape = 'u32[144,128]{1,0:T(1,128)}', space=vmem, size = 0x12000, scoped, tag = 'internal scratch']
  %s0 = inlined_call_operand.vmem [shape: f32[2,16,32], index: 0, kind: input, shape index: {}]
  %s1 = inlined_call_operand.vmem [shape: f32[1,32], index: 1, kind: input, shape index: {}]
  %s2 = inlined_call_operand.hbm [shape: f32[16,32], index: 2, kind: input, shape index: {}]
  %s3 = inlined_call_operand.vmem [shape: f32[32,32], index: 3, kind: input, shape index: {}]
  %s4 = inlined_call_operand.vmem [shape: f32[1,32], index: 4, kind: input, shape index: {}]
  %s5 = inlined_call_operand.vmem [shape: f32[32,64], index: 5, kind: input, shape index: {}]
  %s6 = inlined_call_operand.hbm [shape: f32[1,64], index: 6, kind: input, shape index: {}]
  %s7 = inlined_call_operand.vmem [shape: f32[32,16], index: 7, kind: input, shape index: {}]
  %s8 = inlined_call_operand.vmem [shape: f32[1,16], index: 8, kind: input, shape index: {}]
  %s9 = inlined_call_operand.vmem [shape: f32[32,4], index: 9, kind: input, shape index: {}]
  %s10 = inlined_call_operand.vmem [shape: f32[4,32], index: 10, kind: input, shape index: {}]
  %s11 = inlined_call_operand.hbm [shape: f32[2,16], index: 11, kind: output, shape index: {}]
  %s12 = sld [smem:[#allocation0]]
  $region62: #{tpu_custom_call.1} parent=0
    _
  %s14 = ssub.s32 1, %s12
  %s15 = scalar_select 0, %s14, %s12
  $region1: #{tpu_custom_call.1} parent=0
    #allocation2 [shape = 'u8[8192]{0}', space=vmem, size = 0x2000, scoped, tag = 'input window, operand 2, single buffered']
    #allocation3 [shape = 's32[1]{0}', space=sflag, size = 0x4, scoped, tag = 'scoped memory for tpu_custom_call.1']
    #allocation4 [shape = 's32[1]{0}', space=sflag, size = 0x4, scoped, tag = 'scoped memory for tpu_custom_call.1']
    #allocation5 [shape = 'u8[512]{0}', space=vmem, size = 0x400, scoped, tag = 'input window, operand 6, single buffered']
    #allocation6 [shape = 's32[1]{0}', space=sflag, size = 0x4, scoped, tag = 'scoped memory for tpu_custom_call.1']
    #allocation7 [shape = 'u8[1024]{0}', space=vmem, size = 0x400, scoped, tag = 'output window, operand 0, single buffered']
    %16 = vsyncpa [#allocation3], 0
    %17 = vsyncpa [#allocation6], 0
    %18 = vsyncpa [#allocation4], 0
    // Predicated region
    $region2: #{tpu_custom_call.1} parent=1 // pred_check
      _
    $region3: #{tpu_custom_call.1} parent=1 // pred_check_branch
      %20 = sbr.rel (0) target = $region5
    $region4: #{tpu_custom_call.1} parent=1 // pred_region
      _
    $region5: #{tpu_custom_call.1} parent=1 // pred_fallthru
      _
    // Predicated region
    $region6: #{tpu_custom_call.1} parent=1 // pred_check
      _
    $region7: #{tpu_custom_call.1} parent=1 // pred_check_branch
      %22 = sbr.rel (0) target = $region9
    $region8: #{tpu_custom_call.1} parent=1 // pred_region
      _
    $region9: #{tpu_custom_call.1} parent=1 // pred_fallthru
      _
    // Predicated region
    $region10: #{tpu_custom_call.1} parent=1 // pred_check
      _
    $region11: #{tpu_custom_call.1} parent=1 // pred_check_branch
      %24 = sbr.rel (0) target = $region13
    $region12: #{tpu_custom_call.1} parent=1 // pred_region
      %s26 = ssub.s32 256, 256
      %27 = vsyncadd [#allocation3], %s26
      %s28 = sshll.u32 [#allocation2], 4
      %s29 = int_to_ptr.vmem [resolvable:$true] %s28
      %34 = dma.hbm_to_vmem [thread:$0]  %s2, 256, %s29, [#allocation3], 128, 128, 8
    $region13: #{tpu_custom_call.1} parent=1 // pred_fallthru
      _
    // Predicated region
    $region14: #{tpu_custom_call.1} parent=1 // pred_check
      _
    $region15: #{tpu_custom_call.1} parent=1 // pred_check_branch
      %36 = sbr.rel (0) target = $region17
    $region16: #{tpu_custom_call.1} parent=1 // pred_region
      _
    $region17: #{tpu_custom_call.1} parent=1 // pred_fallthru
      _
    // Predicated region
    $region18: #{tpu_custom_call.1} parent=1 // pred_check
      _
    $region19: #{tpu_custom_call.1} parent=1 // pred_check_branch
      %38 = sbr.rel (0) target = $region21
    $region20: #{tpu_custom_call.1} parent=1 // pred_region
      _
    $region21: #{tpu_custom_call.1} parent=1 // pred_fallthru
      _
    // Predicated region
    $region22: #{tpu_custom_call.1} parent=1 // pred_check
      _
    $region23: #{tpu_custom_call.1} parent=1 // pred_check_branch
      %40 = sbr.rel (0) target = $region25
    $region24: #{tpu_custom_call.1} parent=1 // pred_region
      _
    $region25: #{tpu_custom_call.1} parent=1 // pred_fallthru
      _
    // Predicated region
    $region26: #{tpu_custom_call.1} parent=1 // pred_check
      _
    $region27: #{tpu_custom_call.1} parent=1 // pred_check_branch
      %42 = sbr.rel (0) target = $region29
    $region28: #{tpu_custom_call.1} parent=1 // pred_region
      %s44 = ssub.s32 16, 16
      %45 = vsyncadd [#allocation6], %s44
      %s47 = sshll.u32 [#allocation5], 4
      %s48 = int_to_ptr.vmem [resolvable:$true] %s47
      %50 = dma.hbm_to_vmem [thread:$0]  %s6, 16, %s48, [#allocation6]
    $region29: #{tpu_custom_call.1} parent=1 // pred_fallthru
      _
    // Predicated region
    $region30: #{tpu_custom_call.1} parent=1 // pred_check
      _
    $region31: #{tpu_custom_call.1} parent=1 // pred_check_branch
      %52 = sbr.rel (0) target = $region33
    $region32: #{tpu_custom_call.1} parent=1 // pred_region
      _
    $region33: #{tpu_custom_call.1} parent=1 // pred_fallthru
      _
    // Predicated region
    $region34: #{tpu_custom_call.1} parent=1 // pred_check
      _
    $region35: #{tpu_custom_call.1} parent=1 // pred_check_branch
      %54 = sbr.rel (0) target = $region37
    $region36: #{tpu_custom_call.1} parent=1 // pred_region
      _
    $region37: #{tpu_custom_call.1} parent=1 // pred_fallthru
      _
    // Predicated region
    $region38: #{tpu_custom_call.1} parent=1 // pred_check
      _
    $region39: #{tpu_custom_call.1} parent=1 // pred_check_branch
      %56 = sbr.rel (0) target = $region41
    $region40: #{tpu_custom_call.1} parent=1 // pred_region
      _
    $region41: #{tpu_custom_call.1} parent=1 // pred_fallthru
      _
    // Predicated region
    $region42: #{tpu_custom_call.1} parent=1 // pred_check
      _
    $region43: #{tpu_custom_call.1} parent=1 // pred_check_branch
      %58 = sbr.rel (0) target = $region45
    $region44: #{tpu_custom_call.1} parent=1 // pred_region
      _
    $region45: #{tpu_custom_call.1} parent=1 // pred_fallthru
      _
    // Predicated region
    $region46: #{tpu_custom_call.1} parent=1 // pred_check
      _
    $region47: #{tpu_custom_call.1} parent=1 // pred_check_branch
      %60 = sbr.rel (0) target = $region49
    $region48: #{tpu_custom_call.1} parent=1 // pred_region
      %61 = dma.done [#allocation3], 256
    $region49: #{tpu_custom_call.1} parent=1 // pred_fallthru
      _
    // Predicated region
    $region50: #{tpu_custom_call.1} parent=1 // pred_check
      _
    $region51: #{tpu_custom_call.1} parent=1 // pred_check_branch
      %63 = sbr.rel (0) target = $region53
    $region52: #{tpu_custom_call.1} parent=1 // pred_region
      %64 = dma.done [#allocation6], 16
    $region53: #{tpu_custom_call.1} parent=1 // pred_fallthru
      _
    %v65 = vld [vmem:[%s0] sm:$0xff]
    %v66 = vld [vmem:[%s0 + $0x8] sm:$0xff]
    %v67 = vld [vmem:[%s0 + $0x10] sm:$0xff]
    %v68 = vld [vmem:[%s0 + $0x18] sm:$0xff]
    %vm69 = vcmask 261120
    %v70 = vsel %vm69, %v65, 0.0
    %v71 = vsel %vm69, %v66, 0.0
    %v72 = vadd.f32 %v70, %v71
    %v73 = vrot.slane %v72, 4
    %v74 = vadd.f32 %v72, %v73
    %v75 = vrot.slane %v74, 2
    %v76 = vadd.f32 %v74, %v75
    %v77 = vrot.slane %v76, 1
    %v78 = vadd.f32 %v76, %v77
    %v79 = vsel %vm69, %v67, 0.0
    %v80 = vsel %vm69, %v68, 0.0
    %v81 = vadd.f32 %v79, %v80
    %v82 = vrot.slane %v81, 4
    %v83 = vadd.f32 %v81, %v82
    %v84 = vrot.slane %v83, 2
    %v85 = vadd.f32 %v83, %v84
    %v86 = vrot.slane %v85, 1
    %v87 = vadd.f32 %v85, %v86
    %v88 = vrcp.pop 16.0
    %v89 = vmul.f32 %v78, %v88
    %v90 = vmul.f32 %v87, %v88
    %v91 = vld [vmem:[%s1] sm:$0x1]
    %v93 = vlaneseq
    %v94 = vshrl.u32 %v93, 7
    %v95 = vsub.s32 0, %v94
    %v96 = vrot.slane %v91, %v95
    %v98 = vadd.f32 %v89, %v96
    %v99 = vadd.f32 %v90, %v96
    %v100 = vld [vmem:[#allocation2] sm:$0xff]
    %v101 = vld [vmem:[#allocation2 + $0x8] sm:$0xff]
    %v102 = vadd.f32 %v65, %v100
    %v103 = vadd.f32 %v66, %v101
    %v104 = vadd.f32 %v67, %v100
    %v105 = vadd.f32 %v68, %v101
    %v106 = vld [vmem:[%s5] sm:$0xff]
    %v107 = vld [vmem:[%s5 + $0x8] sm:$0xff]
    %v108 = vld [vmem:[%s5 + $0x10] sm:$0xff]
    %v109 = vld [vmem:[%s5 + $0x18] sm:$0xff]
    %v110 = vld [vmem:[#allocation5] sm:$0x1]
    %v112 = vlaneseq
    %v113 = vshrl.u32 %v112, 7
    %v114 = vsub.s32 0, %v113
    %v115 = vrot.slane %v110, %v114
    %v118 = vsel %vm69, %v102, 0
    %v121 = vsel %vm69, %v103, 0
    %v124 = vsel %vm69, %v104, 0
    %v127 = vsel %vm69, %v105, 0
    %129 = vmatprep.subr.mxu0 0.0
    %130 = vmatpush1.msra.mxu0 %v106
    %131 = vmatprep.subr.mxu0 0.0
    %132 = vmatpush1.msra.mxu0 %v107
    %133 = vmatprep.subr.mxu0 0.0
    %134 = vmatpush1.msra.mxu0 %v108
    %135 = vmatprep.subr.mxu0 0.0
    %136 = vmatpush1.msra.mxu0 %v109
    %137 = vmatprep.subr.mxu0 0.0
    %138 = vmatpush1.msra.mxu0 0.0
    %139 = vmatprep.subr.mxu0 0.0
    %140 = vmatpush1.msra.mxu0 0.0
    %141 = vmatprep.subr.mxu0 0.0
    %142 = vmatpush1.msra.mxu0 0.0
    %143 = vmatprep.subr.mxu0 0.0
    %144 = vmatpush1.msra.mxu0 0.0
    %145 = vmatprep.subr.mxu0 0.0
    %146 = vmatpush1.msra.mxu0 0.0
    %147 = vmatprep.subr.mxu0 0.0
    %148 = vmatpush1.msra.mxu0 0.0
    %149 = vmatprep.subr.mxu0 0.0
    %150 = vmatpush1.msra.mxu0 0.0
    %151 = vmatprep.subr.mxu0 0.0
    %152 = vmatpush1.msra.mxu0 0.0
    %153 = vmatprep.subr.mxu0 0.0
    %154 = vmatpush1.msra.mxu0 0.0
    %155 = vmatprep.subr.mxu0 0.0
    %156 = vmatpush1.msra.mxu0 0.0
    %157 = vmatprep.subr.mxu0 0.0
    %158 = vmatpush1.msra.mxu0 0.0
    %159 = vmatprep.subr.mxu0 0.0
    %160 = vmatpush1.msra.mxu0 0.0
    %161 = vmatprep.subr.mxu0 0.0
    %162 = vmatpush1.msra.mxu0 0.0
    %163 = vmatprep.subr.mxu0 0.0
    %164 = vmatpush1.msra.mxu0 0.0
    %165 = vmatprep.subr.mxu0 0.0
    %166 = vmatpush1.msra.mxu0 0.0
    %167 = vmatprep.subr.mxu0 0.0
    %168 = vmatpush1.msra.mxu0 0.0
    %169 = vmatprep.subr.mxu0 0.0
    %170 = vmatpush1.msra.mxu0 0.0
    %171 = vmatprep.subr.mxu0 0.0
    %172 = vmatpush1.msra.mxu0 0.0
    %173 = vmatprep.subr.mxu0 0.0
    %174 = vmatpush1.msra.mxu0 0.0
    %175 = vmatprep.subr.mxu0 0.0
    %176 = vmatpush1.msra.mxu0 0.0
    %177 = vmatprep.subr.mxu0 0.0
    %178 = vmatpush1.msra.mxu0 0.0
    %179 = vmatprep.subr.mxu0 0.0
    %180 = vmatpush1.msra.mxu0 0.0
    %181 = vmatprep.subr.mxu0 0.0
    %182 = vmatpush1.msra.mxu0 0.0
    %183 = vmatprep.subr.mxu0 0.0
    %184 = vmatpush1.msra.mxu0 0.0
    %185 = vmatprep.subr.mxu0 0.0
    %186 = vmatpush1.msra.mxu0 0.0
    %187 = vmatprep.subr.mxu0 0.0
    %188 = vmatpush1.msra.mxu0 0.0
    %189 = vmatprep.subr.mxu0 0.0
    %190 = vmatpush1.msra.mxu0 0.0
    %191 = vmatprep.subr.mxu0 0.0
    %192 = vmatpush1.msra.mxu0 0.0
    %193 = vmatprep.mubr.f32.mxu0 0.0
    %194 = vmatmul.mubr.f32.gmra.mrb[0].mxu0 %v118
    %v195 = vpop.f32.mrb[0].mxu0
    %v196 = vadd.f32 %v115, %v195
    %v197 = vpop.f32.mrb[0].mxu0
    %198 = vmatprep.mubr.f32.mxu0 0.0
    %199 = vmatmul.mubr.f32.gmra.mrb[0].mxu0 %v121
    %v200 = vpop.f32.mrb[0].mxu0
    %v201 = vadd.f32 %v115, %v200
    %v202 = vpop.f32.mrb[0].mxu0
    %203 = vmatprep.mubr.f32.mxu0 0.0
    %204 = vmatmul.mubr.f32.gmra.mrb[0].mxu0 %v124
    %v205 = vpop.f32.mrb[0].mxu0
    %v206 = vadd.f32 %v115, %v205
    %v207 = vpop.f32.mrb[0].mxu0
    %208 = vmatprep.mubr.f32.mxu0 0.0
    %209 = vmatmul.mubr.f32.gmra.mrb[0].mxu0 %v127
    %v210 = vpop.f32.mrb[0].mxu0
    %v211 = vadd.f32 %v115, %v210
    %v212 = vpop.f32.mrb[0].mxu0
    %213 = vdwg.mxu0
    %v214 = vld [vmem:[%s3] sm:$0xff]
    %v215 = vld [vmem:[%s3 + $0x8] sm:$0xff]
    %v216 = vld [vmem:[%s3 + $0x10] sm:$0xff]
    %v217 = vld [vmem:[%s3 + $0x18] sm:$0xff]
    %v218 = vld [vmem:[%s4] sm:$0x1]
    %v220 = vlaneseq
    %v221 = vshrl.u32 %v220, 7
    %v222 = vsub.s32 0, %v221
    %v223 = vrot.slane %v218, %v222
    %v227 = vrot.slane %v99, 7
    %vm228 = vcmask 1041409
    %v229 = vsel %vm228, %v227, %v98
    %v230 = vsel %vm69, %v229, 0
    %232 = vmatprep.subr.mxu0 0.0
    %233 = vmatpush1.msra.mxu0 %v214
    %234 = vmatprep.subr.mxu0 0.0
    %235 = vmatpush1.msra.mxu0 %v215
    %236 = vmatprep.subr.mxu0 0.0
    %237 = vmatpush1.msra.mxu0 %v216
    %238 = vmatprep.subr.mxu0 0.0
    %239 = vmatpush1.msra.mxu0 %v217
    %240 = vmatprep.subr.mxu0 0.0
    %241 = vmatpush1.msra.mxu0 0.0
    %242 = vmatprep.subr.mxu0 0.0
    %243 = vmatpush1.msra.mxu0 0.0
    %244 = vmatprep.subr.mxu0 0.0
    %245 = vmatpush1.msra.mxu0 0.0
    %246 = vmatprep.subr.mxu0 0.0
    %247 = vmatpush1.msra.mxu0 0.0
    %248 = vmatprep.subr.mxu0 0.0
    %249 = vmatpush1.msra.mxu0 0.0
    %250 = vmatprep.subr.mxu0 0.0
    %251 = vmatpush1.msra.mxu0 0.0
    %252 = vmatprep.subr.mxu0 0.0
    %253 = vmatpush1.msra.mxu0 0.0
    %254 = vmatprep.subr.mxu0 0.0
    %255 = vmatpush1.msra.mxu0 0.0
    %256 = vmatprep.subr.mxu0 0.0
    %257 = vmatpush1.msra.mxu0 0.0
    %258 = vmatprep.subr.mxu0 0.0
    %259 = vmatpush1.msra.mxu0 0.0
    %260 = vmatprep.subr.mxu0 0.0
    %261 = vmatpush1.msra.mxu0 0.0
    %262 = vmatprep.subr.mxu0 0.0
    %263 = vmatpush1.msra.mxu0 0.0
    %264 = vmatprep.subr.mxu0 0.0
    %265 = vmatpush1.msra.mxu0 0.0
    %266 = vmatprep.subr.mxu0 0.0
    %267 = vmatpush1.msra.mxu0 0.0
    %268 = vmatprep.subr.mxu0 0.0
    %269 = vmatpush1.msra.mxu0 0.0
    %270 = vmatprep.subr.mxu0 0.0
    %271 = vmatpush1.msra.mxu0 0.0
    %272 = vmatprep.subr.mxu0 0.0
    %273 = vmatpush1.msra.mxu0 0.0
    %274 = vmatprep.subr.mxu0 0.0
    %275 = vmatpush1.msra.mxu0 0.0
    %276 = vmatprep.subr.mxu0 0.0
    %277 = vmatpush1.msra.mxu0 0.0
    %278 = vmatprep.subr.mxu0 0.0
    %279 = vmatpush1.msra.mxu0 0.0
    %280 = vmatprep.subr.mxu0 0.0
    %281 = vmatpush1.msra.mxu0 0.0
    %282 = vmatprep.subr.mxu0 0.0
    %283 = vmatpush1.msra.mxu0 0.0
    %284 = vmatprep.subr.mxu0 0.0
    %285 = vmatpush1.msra.mxu0 0.0
    %286 = vmatprep.subr.mxu0 0.0
    %287 = vmatpush1.msra.mxu0 0.0
    %288 = vmatprep.subr.mxu0 0.0
    %289 = vmatpush1.msra.mxu0 0.0
    %290 = vmatprep.subr.mxu0 0.0
    %291 = vmatpush1.msra.mxu0 0.0
    %292 = vmatprep.subr.mxu0 0.0
    %293 = vmatpush1.msra.mxu0 0.0
    %294 = vmatprep.subr.mxu0 0.0
    %295 = vmatpush1.msra.mxu0 0.0
    %296 = vmatprep.mubr.f32.mxu0 0.0
    %297 = vmatmul.mubr.f32.gmra.mrb[0].mxu0 %v230
    %v298 = vpop.f32.mrb[0].mxu0
    %v299 = vadd.f32 %v223, %v298
    %v300 = vpop.f32.mrb[0].mxu0
    %301 = vdwg.mxu0
    %302 = vmatprep.subr.mxu0 0.0
    %303 = vmatpush1.msra.mxu0 %v106
    %304 = vmatprep.subr.mxu0 0.0
    %305 = vmatpush1.msra.mxu0 %v107
    %306 = vmatprep.subr.mxu0 0.0
    %307 = vmatpush1.msra.mxu0 %v108
    %308 = vmatprep.subr.mxu0 0.0
    %309 = vmatpush1.msra.mxu0 %v109
    %310 = vmatprep.subr.mxu0 0.0
    %311 = vmatpush1.msra.mxu0 0.0
    %312 = vmatprep.subr.mxu0 0.0
    %313 = vmatpush1.msra.mxu0 0.0
    %314 = vmatprep.subr.mxu0 0.0
    %315 = vmatpush1.msra.mxu0 0.0
    %316 = vmatprep.subr.mxu0 0.0
    %317 = vmatpush1.msra.mxu0 0.0
    %318 = vmatprep.subr.mxu0 0.0
    %319 = vmatpush1.msra.mxu0 0.0
    %320 = vmatprep.subr.mxu0 0.0
    %321 = vmatpush1.msra.mxu0 0.0
    %322 = vmatprep.subr.mxu0 0.0
    %323 = vmatpush1.msra.mxu0 0.0
    %324 = vmatprep.subr.mxu0 0.0
    %325 = vmatpush1.msra.mxu0 0.0
    %326 = vmatprep.subr.mxu0 0.0
    %327 = vmatpush1.msra.mxu0 0.0
    %328 = vmatprep.subr.mxu0 0.0
    %329 = vmatpush1.msra.mxu0 0.0
    %330 = vmatprep.subr.mxu0 0.0
    %331 = vmatpush1.msra.mxu0 0.0
    %332 = vmatprep.subr.mxu0 0.0
    %333 = vmatpush1.msra.mxu0 0.0
    %334 = vmatprep.subr.mxu0 0.0
    %335 = vmatpush1.msra.mxu0 0.0
    %336 = vmatprep.subr.mxu0 0.0
    %337 = vmatpush1.msra.mxu0 0.0
    %338 = vmatprep.subr.mxu0 0.0
    %339 = vmatpush1.msra.mxu0 0.0
    %340 = vmatprep.subr.mxu0 0.0
    %341 = vmatpush1.msra.mxu0 0.0
    %342 = vmatprep.subr.mxu0 0.0
    %343 = vmatpush1.msra.mxu0 0.0
    %344 = vmatprep.subr.mxu0 0.0
    %345 = vmatpush1.msra.mxu0 0.0
    %346 = vmatprep.subr.mxu0 0.0
    %347 = vmatpush1.msra.mxu0 0.0
    %348 = vmatprep.subr.mxu0 0.0
    %349 = vmatpush1.msra.mxu0 0.0
    %350 = vmatprep.subr.mxu0 0.0
    %351 = vmatpush1.msra.mxu0 0.0
    %352 = vmatprep.subr.mxu0 0.0
    %353 = vmatpush1.msra.mxu0 0.0
    %354 = vmatprep.subr.mxu0 0.0
    %355 = vmatpush1.msra.mxu0 0.0
    %356 = vmatprep.subr.mxu0 0.0
    %357 = vmatpush1.msra.mxu0 0.0
    %358 = vmatprep.subr.mxu0 0.0
    %359 = vmatpush1.msra.mxu0 0.0
    %360 = vmatprep.subr.mxu0 0.0
    %361 = vmatpush1.msra.mxu0 0.0
    %362 = vmatprep.subr.mxu0 0.0
    %363 = vmatpush1.msra.mxu0 0.0
    %364 = vmatprep.subr.mxu0 0.0
    %365 = vmatpush1.msra.mxu0 0.0
    %366 = vmatprep.mubr.f32.mxu0 0.0
    %367 = vmatmul.mubr.f32.gmra.mrb[0].mxu0 %v230
    %v368 = vpop.f32.mrb[0].mxu0
    %v369 = vadd.f32 %v115, %v368
    %v370 = vpop.f32.mrb[0].mxu0
    %371 = vdwg.mxu0
    %v372 = vld [vmem:[%s9] sm:$0xff]
    %v373 = vld [vmem:[%s9 + $0x8] sm:$0xff]
    %v374 = vld [vmem:[%s9 + $0x10] sm:$0xff]
    %v375 = vld [vmem:[%s9 + $0x18] sm:$0xff]
    %v376 = vld [vmem:[%s10] sm:$0xf]
    %v379 = vunpack.c.l.s4 1966171168
    %v380 = vunpack.c.0.s8 %v379
    %v381 = vlaneseq
    %v382 = vshrl.u32 %v381, 7
    %v383 = vsub.s32 %v380, %v382
    %v384 = vrot.slane %v299, %v383
    %v385 = vcombine.high %v384, %v384
    %v387 = vunpack.c.l.s4 1966171168
    %v388 = vunpack.c.0.s8 %v387
    %v389 = vlaneseq
    %v390 = vshrl.u32 %v389, 7
    %v391 = vsub.s32 %v388, %v390
    %v392 = vrot.slane %v384, %v391
    %v394 = vunpack.c.l.s4 1966171168
    %v395 = vunpack.c.0.s8 %v394
    %v396 = vlaneseq
    %v397 = vshrl.u32 %v396, 7
    %v398 = vsub.s32 %v395, %v397
    %v399 = vrot.slane %v385, %v398
    %v400 = vlaneseq
    %v401 = vshrl.u32 %v400, 7
    %v402 = vsub.s32 0, %v401
    %v403 = vrot.slane %v392, %v402
    %v404 = vlaneseq
    %v405 = vshrl.u32 %v404, 7
    %v406 = vsub.s32 0, %v405
    %v407 = vrot.slane %v399, %v406
    %v410 = vmul.f32 %v403, %v196
    %v411 = vmul.f32 %v403, %v201
    %v412 = vmul.f32 %v407, %v206
    %v413 = vmul.f32 %v407, %v211
    %v415 = vsel %vm69, %v410, 0
    %v418 = vsel %vm69, %v411, 0
    %v421 = vsel %vm69, %v412, 0
    %v424 = vsel %vm69, %v413, 0
    %426 = vmatprep.subr.mxu0 0.0
    %427 = vmatpush1.msra.mxu0 %v372
    %428 = vmatprep.subr.mxu0 0.0
    %429 = vmatpush1.msra.mxu0 %v373
    %430 = vmatprep.subr.mxu0 0.0
    %431 = vmatpush1.msra.mxu0 %v374
    %432 = vmatprep.subr.mxu0 0.0
    %433 = vmatpush1.msra.mxu0 %v375
    %434 = vmatprep.subr.mxu0 0.0
    %435 = vmatpush1.msra.mxu0 0.0
    %436 = vmatprep.subr.mxu0 0.0
    %437 = vmatpush1.msra.mxu0 0.0
    %438 = vmatprep.subr.mxu0 0.0
    %439 = vmatpush1.msra.mxu0 0.0
    %440 = vmatprep.subr.mxu0 0.0
    %441 = vmatpush1.msra.mxu0 0.0
    %442 = vmatprep.subr.mxu0 0.0
    %443 = vmatpush1.msra.mxu0 0.0
    %444 = vmatprep.subr.mxu0 0.0
    %445 = vmatpush1.msra.mxu0 0.0
    %446 = vmatprep.subr.mxu0 0.0
    %447 = vmatpush1.msra.mxu0 0.0
    %448 = vmatprep.subr.mxu0 0.0
    %449 = vmatpush1.msra.mxu0 0.0
    %450 = vmatprep.subr.mxu0 0.0
    %451 = vmatpush1.msra.mxu0 0.0
    %452 = vmatprep.subr.mxu0 0.0
    %453 = vmatpush1.msra.mxu0 0.0
    %454 = vmatprep.subr.mxu0 0.0
    %455 = vmatpush1.msra.mxu0 0.0
    %456 = vmatprep.subr.mxu0 0.0
    %457 = vmatpush1.msra.mxu0 0.0
    %458 = vmatprep.subr.mxu0 0.0
    %459 = vmatpush1.msra.mxu0 0.0
    %460 = vmatprep.subr.mxu0 0.0
    %461 = vmatpush1.msra.mxu0 0.0
    %462 = vmatprep.subr.mxu0 0.0
    %463 = vmatpush1.msra.mxu0 0.0
    %464 = vmatprep.subr.mxu0 0.0
    %465 = vmatpush1.msra.mxu0 0.0
    %466 = vmatprep.subr.mxu0 0.0
    %467 = vmatpush1.msra.mxu0 0.0
    %468 = vmatprep.subr.mxu0 0.0
    %469 = vmatpush1.msra.mxu0 0.0
    %470 = vmatprep.subr.mxu0 0.0
    %471 = vmatpush1.msra.mxu0 0.0
    %472 = vmatprep.subr.mxu0 0.0
    %473 = vmatpush1.msra.mxu0 0.0
    %474 = vmatprep.subr.mxu0 0.0
    %475 = vmatpush1.msra.mxu0 0.0
    %476 = vmatprep.subr.mxu0 0.0
    %477 = vmatpush1.msra.mxu0 0.0
    %478 = vmatprep.subr.mxu0 0.0
    %479 = vmatpush1.msra.mxu0 0.0
    %480 = vmatprep.subr.mxu0 0.0
    %481 = vmatpush1.msra.mxu0 0.0
    %482 = vmatprep.subr.mxu0 0.0
    %483 = vmatpush1.msra.mxu0 0.0
    %484 = vmatprep.subr.mxu0 0.0
    %485 = vmatpush1.msra.mxu0 0.0
    %486 = vmatprep.subr.mxu0 0.0
    %487 = vmatpush1.msra.mxu0 0.0
    %488 = vmatprep.subr.mxu0 0.0
    %489 = vmatpush1.msra.mxu0 0.0
    %490 = vmatprep.mubr.f32.mxu0 0.0
    %491 = vmatmul.mubr.f32.gmra.mrb[0].mxu0 %v415
    %v492 = vpop.f32.mrb[0].mxu0
    %v493 = vadd.f32 0.0, %v492
    %v494 = vpop.f32.mrb[0].mxu0
    %495 = vmatprep.mubr.f32.mxu0 0.0
    %496 = vmatmul.mubr.f32.gmra.mrb[0].mxu0 %v418
    %v497 = vpop.f32.mrb[0].mxu0
    %v498 = vadd.f32 0.0, %v497
    %v499 = vpop.f32.mrb[0].mxu0
    %500 = vmatprep.mubr.f32.mxu0 0.0
    %501 = vmatmul.mubr.f32.gmra.mrb[0].mxu0 %v421
    %v502 = vpop.f32.mrb[0].mxu0
    %v503 = vadd.f32 0.0, %v502
    %v504 = vpop.f32.mrb[0].mxu0
    %505 = vmatprep.mubr.f32.mxu0 0.0
    %506 = vmatmul.mubr.f32.gmra.mrb[0].mxu0 %v424
    %v507 = vpop.f32.mrb[0].mxu0
    %v508 = vadd.f32 0.0, %v507
    %v509 = vpop.f32.mrb[0].mxu0
    %510 = vdwg.mxu0
    %v511 = vmul.f32 %v299, %v369
    %v513 = vsel %vm69, %v511, 0
    %515 = vmatprep.subr.mxu0 0.0
    %516 = vmatpush1.msra.mxu0 %v372
    %517 = vmatprep.subr.mxu0 0.0
    %518 = vmatpush1.msra.mxu0 %v373
    %519 = vmatprep.subr.mxu0 0.0
    %520 = vmatpush1.msra.mxu0 %v374
    %521 = vmatprep.subr.mxu0 0.0
    %522 = vmatpush1.msra.mxu0 %v375
    %523 = vmatprep.subr.mxu0 0.0
    %524 = vmatpush1.msra.mxu0 0.0
    %525 = vmatprep.subr.mxu0 0.0
    %526 = vmatpush1.msra.mxu0 0.0
    %527 = vmatprep.subr.mxu0 0.0
    %528 = vmatpush1.msra.mxu0 0.0
    %529 = vmatprep.subr.mxu0 0.0
    %530 = vmatpush1.msra.mxu0 0.0
    %531 = vmatprep.subr.mxu0 0.0
    %532 = vmatpush1.msra.mxu0 0.0
    %533 = vmatprep.subr.mxu0 0.0
    %534 = vmatpush1.msra.mxu0 0.0
    %535 = vmatprep.subr.mxu0 0.0
    %536 = vmatpush1.msra.mxu0 0.0
    %537 = vmatprep.subr.mxu0 0.0
    %538 = vmatpush1.msra.mxu0 0.0
    %539 = vmatprep.subr.mxu0 0.0
    %540 = vmatpush1.msra.mxu0 0.0
    %541 = vmatprep.subr.mxu0 0.0
    %542 = vmatpush1.msra.mxu0 0.0
    %543 = vmatprep.subr.mxu0 0.0
    %544 = vmatpush1.msra.mxu0 0.0
    %545 = vmatprep.subr.mxu0 0.0
    %546 = vmatpush1.msra.mxu0 0.0
    %547 = vmatprep.subr.mxu0 0.0
    %548 = vmatpush1.msra.mxu0 0.0
    %549 = vmatprep.subr.mxu0 0.0
    %550 = vmatpush1.msra.mxu0 0.0
    %551 = vmatprep.subr.mxu0 0.0
    %552 = vmatpush1.msra.mxu0 0.0
    %553 = vmatprep.subr.mxu0 0.0
    %554 = vmatpush1.msra.mxu0 0.0
    %555 = vmatprep.subr.mxu0 0.0
    %556 = vmatpush1.msra.mxu0 0.0
    %557 = vmatprep.subr.mxu0 0.0
    %558 = vmatpush1.msra.mxu0 0.0
    %559 = vmatprep.subr.mxu0 0.0
    %560 = vmatpush1.msra.mxu0 0.0
    %561 = vmatprep.subr.mxu0 0.0
    %562 = vmatpush1.msra.mxu0 0.0
    %563 = vmatprep.subr.mxu0 0.0
    %564 = vmatpush1.msra.mxu0 0.0
    %565 = vmatprep.subr.mxu0 0.0
    %566 = vmatpush1.msra.mxu0 0.0
    %567 = vmatprep.subr.mxu0 0.0
    %568 = vmatpush1.msra.mxu0 0.0
    %569 = vmatprep.subr.mxu0 0.0
    %570 = vmatpush1.msra.mxu0 0.0
    %571 = vmatprep.subr.mxu0 0.0
    %572 = vmatpush1.msra.mxu0 0.0
    %573 = vmatprep.subr.mxu0 0.0
    %574 = vmatpush1.msra.mxu0 0.0
    %575 = vmatprep.subr.mxu0 0.0
    %576 = vmatpush1.msra.mxu0 0.0
    %577 = vmatprep.subr.mxu0 0.0
    %578 = vmatpush1.msra.mxu0 0.0
    %579 = vmatprep.mubr.f32.mxu0 0.0
    %580 = vmatmul.mubr.f32.gmra.mrb[0].mxu0 %v513
    %v581 = vpop.f32.mrb[0].mxu0
    %v582 = vadd.f32 0.0, %v581
    %v583 = vpop.f32.mrb[0].mxu0
    %584 = vdwg.mxu0
    %vm585 = vcmask 31744
    %v586 = vsel %vm585, %v493, -inf
    %v587 = vsel %vm585, %v498, -inf
    %v588 = vmax.f32 %v586, %v587
    %v589 = vrot.slane %v588, 4
    %v590 = vmax.f32 %v588, %v589
    %v591 = vrot.slane %v590, 2
    %v592 = vmax.f32 %v590, %v591
    %v593 = vrot.slane %v592, 1
    %v594 = vmax.f32 %v592, %v593
    %v595 = vsel %vm585, %v503, -inf
    %v596 = vsel %vm585, %v508, -inf
    %v597 = vmax.f32 %v595, %v596
    %v598 = vrot.slane %v597, 4
    %v599 = vmax.f32 %v597, %v598
    %v600 = vrot.slane %v599, 2
    %v601 = vmax.f32 %v599, %v600
    %v602 = vrot.slane %v601, 1
    %v603 = vmax.f32 %v601, %v602
    %v605 = vrot.slane %v582, 1
    %v608 = vmax.f32 %v594, %v582
    %v609 = vmax.f32 %v603, %v605
    %v610 = vlaneseq
    %v611 = vshrl.u32 %v610, 7
    %v612 = vsub.s32 0, %v611
    %v613 = vrot.slane %v608, %v612
    %v614 = vlaneseq
    %v615 = vshrl.u32 %v614, 7
    %v616 = vsub.s32 0, %v615
    %v617 = vrot.slane %v609, %v616
    %v618 = vsub.f32 %v493, %v613
    %v619 = vsub.f32 %v498, %v613
    %v620 = vsub.f32 %v503, %v617
    %v621 = vsub.f32 %v508, %v617
    %v622 = vmul.f32 %v618, 1.442695
    %v623 = vpow.pop %v622
    %v624 = vmul.f32 %v619, 1.442695
    %v625 = vpow.pop %v624
    %v626 = vmul.f32 %v620, 1.442695
    %v627 = vpow.pop %v626
    %v628 = vmul.f32 %v621, 1.442695
    %v629 = vpow.pop %v628
    %v632 = vrot.slane %v609, 7
    %v633 = vsel %vm228, %v632, %v608
    %v635 = vsub.f32 %v582, %v633
    %v636 = vmul.f32 %v635, 1.442695
    %v637 = vpow.pop %v636
    %v638 = vsel %vm585, %v623, 0.0
    %v639 = vsel %vm585, %v625, 0.0
    %v640 = vadd.f32 %v638, %v639
    %v641 = vrot.slane %v640, 4
    %v642 = vadd.f32 %v640, %v641
    %v643 = vrot.slane %v642, 2
    %v644 = vadd.f32 %v642, %v643
    %v645 = vrot.slane %v644, 1
    %v646 = vadd.f32 %v644, %v645
    %v647 = vsel %vm585, %v627, 0.0
    %v648 = vsel %vm585, %v629, 0.0
    %v649 = vadd.f32 %v647, %v648
    %v650 = vrot.slane %v649, 4
    %v651 = vadd.f32 %v649, %v650
    %v652 = vrot.slane %v651, 2
    %v653 = vadd.f32 %v651, %v652
    %v654 = vrot.slane %v653, 1
    %v655 = vadd.f32 %v653, %v654
    %v657 = vrot.slane %v637, 1
    %v660 = vadd.f32 %v646, %v637
    %v661 = vadd.f32 %v655, %v657
    %v662 = vrcp.pop %v660
    %v663 = vrcp.pop %v661
    %v664 = vlaneseq
    %v665 = vshrl.u32 %v664, 7
    %v666 = vsub.s32 0, %v665
    %v667 = vrot.slane %v662, %v666
    %v668 = vlaneseq
    %v669 = vshrl.u32 %v668, 7
    %v670 = vsub.s32 0, %v669
    %v671 = vrot.slane %v663, %v670
    %v672 = vmul.f32 %v623, %v667
    %v673 = vmul.f32 %v625, %v667
    %v674 = vmul.f32 %v627, %v671
    %v675 = vmul.f32 %v629, %v671
    %v678 = vrot.slane %v663, 7
    %v679 = vsel %vm228, %v678, %v662
    %v681 = vmul.f32 %v637, %v679
    %v683 = vsel %vm585, %v672, 0
    %v686 = vsel %vm585, %v673, 0
    %v689 = vsel %vm585, %v674, 0
    %v692 = vsel %vm585, %v675, 0
    %vm694 = vcmask 1043456
    %v696 = vsel %vm694, %v376, 0
    %698 = vmatprep.subr.mxu0 0.0
    %699 = vmatpush1.msra.mxu0 %v696
    %700 = vmatprep.subr.mxu0 0.0
    %701 = vmatpush1.msra.mxu0 0.0
    %702 = vmatprep.subr.mxu0 0.0
    %703 = vmatpush1.msra.mxu0 0.0
    %704 = vmatprep.subr.mxu0 0.0
    %705 = vmatpush1.msra.mxu0 0.0
    %706 = vmatprep.subr.mxu0 0.0
    %707 = vmatpush1.msra.mxu0 0.0
    %708 = vmatprep.subr.mxu0 0.0
    %709 = vmatpush1.msra.mxu0 0.0
    %710 = vmatprep.subr.mxu0 0.0
    %711 = vmatpush1.msra.mxu0 0.0
    %712 = vmatprep.subr.mxu0 0.0
    %713 = vmatpush1.msra.mxu0 0.0
    %714 = vmatprep.subr.mxu0 0.0
    %715 = vmatpush1.msra.mxu0 0.0
    %716 = vmatprep.subr.mxu0 0.0
    %717 = vmatpush1.msra.mxu0 0.0
    %718 = vmatprep.subr.mxu0 0.0
    %719 = vmatpush1.msra.mxu0 0.0
    %720 = vmatprep.subr.mxu0 0.0
    %721 = vmatpush1.msra.mxu0 0.0
    %722 = vmatprep.subr.mxu0 0.0
    %723 = vmatpush1.msra.mxu0 0.0
    %724 = vmatprep.subr.mxu0 0.0
    %725 = vmatpush1.msra.mxu0 0.0
    %726 = vmatprep.subr.mxu0 0.0
    %727 = vmatpush1.msra.mxu0 0.0
    %728 = vmatprep.subr.mxu0 0.0
    %729 = vmatpush1.msra.mxu0 0.0
    %730 = vmatprep.subr.mxu0 0.0
    %731 = vmatpush1.msra.mxu0 0.0
    %732 = vmatprep.subr.mxu0 0.0
    %733 = vmatpush1.msra.mxu0 0.0
    %734 = vmatprep.subr.mxu0 0.0
    %735 = vmatpush1.msra.mxu0 0.0
    %736 = vmatprep.subr.mxu0 0.0
    %737 = vmatpush1.msra.mxu0 0.0
    %738 = vmatprep.subr.mxu0 0.0
    %739 = vmatpush1.msra.mxu0 0.0
    %740 = vmatprep.subr.mxu0 0.0
    %741 = vmatpush1.msra.mxu0 0.0
    %742 = vmatprep.subr.mxu0 0.0
    %743 = vmatpush1.msra.mxu0 0.0
    %744 = vmatprep.subr.mxu0 0.0
    %745 = vmatpush1.msra.mxu0 0.0
    %746 = vmatprep.subr.mxu0 0.0
    %747 = vmatpush1.msra.mxu0 0.0
    %748 = vmatprep.subr.mxu0 0.0
    %749 = vmatpush1.msra.mxu0 0.0
    %750 = vmatprep.subr.mxu0 0.0
    %751 = vmatpush1.msra.mxu0 0.0
    %752 = vmatprep.subr.mxu0 0.0
    %753 = vmatpush1.msra.mxu0 0.0
    %754 = vmatprep.subr.mxu0 0.0
    %755 = vmatpush1.msra.mxu0 0.0
    %756 = vmatprep.subr.mxu0 0.0
    %757 = vmatpush1.msra.mxu0 0.0
    %758 = vmatprep.subr.mxu0 0.0
    %759 = vmatpush1.msra.mxu0 0.0
    %760 = vmatprep.subr.mxu0 0.0
    %761 = vmatpush1.msra.mxu0 0.0
    %762 = vmatprep.mubr.f32.mxu0 0.0
    %763 = vmatmul.mubr.f32.gmra.mrb[0].mxu0 %v683
    %v764 = vpop.f32.mrb[0].mxu0
    %v765 = vadd.f32 0.0, %v764
    %v766 = vpop.f32.mrb[0].mxu0
    %767 = vmatprep.mubr.f32.mxu0 0.0
    %768 = vmatmul.mubr.f32.gmra.mrb[0].mxu0 %v686
    %v769 = vpop.f32.mrb[0].mxu0
    %v770 = vadd.f32 0.0, %v769
    %v771 = vpop.f32.mrb[0].mxu0
    %772 = vmatprep.mubr.f32.mxu0 0.0
    %773 = vmatmul.mubr.f32.gmra.mrb[0].mxu0 %v689
    %v774 = vpop.f32.mrb[0].mxu0
    %v775 = vadd.f32 0.0, %v774
    %v776 = vpop.f32.mrb[0].mxu0
    %777 = vmatprep.mubr.f32.mxu0 0.0
    %778 = vmatmul.mubr.f32.gmra.mrb[0].mxu0 %v692
    %v779 = vpop.f32.mrb[0].mxu0
    %v780 = vadd.f32 0.0, %v779
    %v781 = vpop.f32.mrb[0].mxu0
    %782 = vdwg.mxu0
    %v784 = vsel %vm585, %v681, 0
    %786 = vmatprep.subr.mxu0 0.0
    %787 = vmatpush1.msra.mxu0 %v696
    %788 = vmatprep.subr.mxu0 0.0
    %789 = vmatpush1.msra.mxu0 0.0
    %790 = vmatprep.subr.mxu0 0.0
    %791 = vmatpush1.msra.mxu0 0.0
    %792 = vmatprep.subr.mxu0 0.0
    %793 = vmatpush1.msra.mxu0 0.0
    %794 = vmatprep.subr.mxu0 0.0
    %795 = vmatpush1.msra.mxu0 0.0
    %796 = vmatprep.subr.mxu0 0.0
    %797 = vmatpush1.msra.mxu0 0.0
    %798 = vmatprep.subr.mxu0 0.0
    %799 = vmatpush1.msra.mxu0 0.0
    %800 = vmatprep.subr.mxu0 0.0
    %801 = vmatpush1.msra.mxu0 0.0
    %802 = vmatprep.subr.mxu0 0.0
    %803 = vmatpush1.msra.mxu0 0.0
    %804 = vmatprep.subr.mxu0 0.0
    %805 = vmatpush1.msra.mxu0 0.0
    %806 = vmatprep.subr.mxu0 0.0
    %807 = vmatpush1.msra.mxu0 0.0
    %808 = vmatprep.subr.mxu0 0.0
    %809 = vmatpush1.msra.mxu0 0.0
    %810 = vmatprep.subr.mxu0 0.0
    %811 = vmatpush1.msra.mxu0 0.0
    %812 = vmatprep.subr.mxu0 0.0
    %813 = vmatpush1.msra.mxu0 0.0
    %814 = vmatprep.subr.mxu0 0.0
    %815 = vmatpush1.msra.mxu0 0.0
    %816 = vmatprep.subr.mxu0 0.0
    %817 = vmatpush1.msra.mxu0 0.0
    %818 = vmatprep.subr.mxu0 0.0
    %819 = vmatpush1.msra.mxu0 0.0
    %820 = vmatprep.subr.mxu0 0.0
    %821 = vmatpush1.msra.mxu0 0.0
    %822 = vmatprep.subr.mxu0 0.0
    %823 = vmatpush1.msra.mxu0 0.0
    %824 = vmatprep.subr.mxu0 0.0
    %825 = vmatpush1.msra.mxu0 0.0
    %826 = vmatprep.subr.mxu0 0.0
    %827 = vmatpush1.msra.mxu0 0.0
    %828 = vmatprep.subr.mxu0 0.0
    %829 = vmatpush1.msra.mxu0 0.0
    %830 = vmatprep.subr.mxu0 0.0
    %831 = vmatpush1.msra.mxu0 0.0
    %832 = vmatprep.subr.mxu0 0.0
    %833 = vmatpush1.msra.mxu0 0.0
    %834 = vmatprep.subr.mxu0 0.0
    %835 = vmatpush1.msra.mxu0 0.0
    %836 = vmatprep.subr.mxu0 0.0
    %837 = vmatpush1.msra.mxu0 0.0
    %838 = vmatprep.subr.mxu0 0.0
    %839 = vmatpush1.msra.mxu0 0.0
    %840 = vmatprep.subr.mxu0 0.0
    %841 = vmatpush1.msra.mxu0 0.0
    %842 = vmatprep.subr.mxu0 0.0
    %843 = vmatpush1.msra.mxu0 0.0
    %844 = vmatprep.subr.mxu0 0.0
    %845 = vmatpush1.msra.mxu0 0.0
    %846 = vmatprep.subr.mxu0 0.0
    %847 = vmatpush1.msra.mxu0 0.0
    %848 = vmatprep.subr.mxu0 0.0
    %849 = vmatpush1.msra.mxu0 0.0
    %850 = vmatprep.mubr.f32.mxu0 0.0
    %851 = vmatmul.mubr.f32.gmra.mrb[0].mxu0 %v784
    %v852 = vpop.f32.mrb[0].mxu0
    %v853 = vadd.f32 0.0, %v852
    %v854 = vpop.f32.mrb[0].mxu0
    %855 = vdwg.mxu0
    %860 = vrot.lane.b32.xlu0 %v196, 96
    %v861 = vpop.permute.xlu0 %860
    %862 = vrot.lane.b32.xlu0 %v201, 96
    %v863 = vpop.permute.xlu0 %862
    %864 = vrot.lane.b32.xlu0 %v206, 96
    %v865 = vpop.permute.xlu0 %864
    %866 = vrot.lane.b32.xlu0 %v211, 96
    %v867 = vpop.permute.xlu0 %866
    %v872 = vmul.f32 %v765, %v861
    %v873 = vmul.f32 %v770, %v863
    %v874 = vmul.f32 %v775, %v865
    %v875 = vmul.f32 %v780, %v867
    %v876 = vsel %vm69, %v872, 0.0
    %v877 = vsel %vm69, %v873, 0.0
    %v878 = vadd.f32 %v876, %v877
    %v879 = vrot.slane %v878, 4
    %v880 = vadd.f32 %v878, %v879
    %v881 = vrot.slane %v880, 2
    %v882 = vadd.f32 %v880, %v881
    %v883 = vrot.slane %v882, 1
    %v884 = vadd.f32 %v882, %v883
    %v885 = vsel %vm69, %v874, 0.0
    %v886 = vsel %vm69, %v875, 0.0
    %v887 = vadd.f32 %v885, %v886
    %v888 = vrot.slane %v887, 4
    %v889 = vadd.f32 %v887, %v888
    %v890 = vrot.slane %v889, 2
    %v891 = vadd.f32 %v889, %v890
    %v892 = vrot.slane %v891, 1
    %v893 = vadd.f32 %v891, %v892
    %895 = vrot.lane.b32.xlu0 %v369, 96
    %v896 = vpop.permute.xlu0 %895
    %v898 = vmul.f32 %v853, %v896
    %v900 = vrot.slane %v898, 1
    %v903 = vadd.f32 %v884, %v898
    %v904 = vadd.f32 %v893, %v900
    %v905 = vld [vmem:[%s7] sm:$0xff]
    %v906 = vld [vmem:[%s7 + $0x8] sm:$0xff]
    %v907 = vld [vmem:[%s7 + $0x10] sm:$0xff]
    %v908 = vld [vmem:[%s7 + $0x18] sm:$0xff]
    %v909 = vld [vmem:[%s8] sm:$0x1]
    %v911 = vlaneseq
    %v912 = vshrl.u32 %v911, 7
    %v913 = vsub.s32 0, %v912
    %v914 = vrot.slane %v909, %v913
    %v918 = vrot.slane %v904, 7
    %v919 = vsel %vm228, %v918, %v903
    %v920 = vsel %vm69, %v919, 0
    %922 = vmatprep.subr.mxu0 0.0
    %923 = vmatpush1.msra.mxu0 %v905
    %924 = vmatprep.subr.mxu0 0.0
    %925 = vmatpush1.msra.mxu0 %v906
    %926 = vmatprep.subr.mxu0 0.0
    %927 = vmatpush1.msra.mxu0 %v907
    %928 = vmatprep.subr.mxu0 0.0
    %929 = vmatpush1.msra.mxu0 %v908
    %930 = vmatprep.subr.mxu0 0.0
    %931 = vmatpush1.msra.mxu0 0.0
    %932 = vmatprep.subr.mxu0 0.0
    %933 = vmatpush1.msra.mxu0 0.0
    %934 = vmatprep.subr.mxu0 0.0
    %935 = vmatpush1.msra.mxu0 0.0
    %936 = vmatprep.subr.mxu0 0.0
    %937 = vmatpush1.msra.mxu0 0.0
    %938 = vmatprep.subr.mxu0 0.0
    %939 = vmatpush1.msra.mxu0 0.0
    %940 = vmatprep.subr.mxu0 0.0
    %941 = vmatpush1.msra.mxu0 0.0
    %942 = vmatprep.subr.mxu0 0.0
    %943 = vmatpush1.msra.mxu0 0.0
    %944 = vmatprep.subr.mxu0 0.0
    %945 = vmatpush1.msra.mxu0 0.0
    %946 = vmatprep.subr.mxu0 0.0
    %947 = vmatpush1.msra.mxu0 0.0
    %948 = vmatprep.subr.mxu0 0.0
    %949 = vmatpush1.msra.mxu0 0.0
    %950 = vmatprep.subr.mxu0 0.0
    %951 = vmatpush1.msra.mxu0 0.0
    %952 = vmatprep.subr.mxu0 0.0
    %953 = vmatpush1.msra.mxu0 0.0
    %954 = vmatprep.subr.mxu0 0.0
    %955 = vmatpush1.msra.mxu0 0.0
    %956 = vmatprep.subr.mxu0 0.0
    %957 = vmatpush1.msra.mxu0 0.0
    %958 = vmatprep.subr.mxu0 0.0
    %959 = vmatpush1.msra.mxu0 0.0
    %960 = vmatprep.subr.mxu0 0.0
    %961 = vmatpush1.msra.mxu0 0.0
    %962 = vmatprep.subr.mxu0 0.0
    %963 = vmatpush1.msra.mxu0 0.0
    %964 = vmatprep.subr.mxu0 0.0
    %965 = vmatpush1.msra.mxu0 0.0
    %966 = vmatprep.subr.mxu0 0.0
    %967 = vmatpush1.msra.mxu0 0.0
    %968 = vmatprep.subr.mxu0 0.0
    %969 = vmatpush1.msra.mxu0 0.0
    %970 = vmatprep.subr.mxu0 0.0
    %971 = vmatpush1.msra.mxu0 0.0
    %972 = vmatprep.subr.mxu0 0.0
    %973 = vmatpush1.msra.mxu0 0.0
    %974 = vmatprep.subr.mxu0 0.0
    %975 = vmatpush1.msra.mxu0 0.0
    %976 = vmatprep.subr.mxu0 0.0
    %977 = vmatpush1.msra.mxu0 0.0
    %978 = vmatprep.subr.mxu0 0.0
    %979 = vmatpush1.msra.mxu0 0.0
    %980 = vmatprep.subr.mxu0 0.0
    %981 = vmatpush1.msra.mxu0 0.0
    %982 = vmatprep.subr.mxu0 0.0
    %983 = vmatpush1.msra.mxu0 0.0
    %984 = vmatprep.subr.mxu0 0.0
    %985 = vmatpush1.msra.mxu0 0.0
    %986 = vmatprep.mubr.f32.mxu0 0.0
    %987 = vmatmul.mubr.f32.gmra.mrb[0].mxu0 %v920
    %v988 = vpop.f32.mrb[0].mxu0
    %v989 = vadd.f32 %v914, %v988
    %v990 = vpop.f32.mrb[0].mxu0
    %991 = vdwg.mxu0
    %vm992 = vcmask 123904
    %993 = vst.msk [vmem:[#allocation7] sm:$0x3] %vm992, %v989
    // Predicated region
    $region54: #{tpu_custom_call.1} parent=1 // pred_check
      _
    $region55: #{tpu_custom_call.1} parent=1 // pred_check_branch
      %995 = sbr.rel (0) target = $region57
    $region56: #{tpu_custom_call.1} parent=1 // pred_region
      %s997 = ssub.s32 32, 32
      %998 = vsyncadd [#allocation4], %s997
      %s1000 = sshll.u32 [#allocation7], 4
      %s1001 = int_to_ptr.vmem [resolvable:$true] %s1000
      %1003 = dma.vmem_to_hbm [thread:$0]  %s1001, 32, %s11, [#allocation4]
    $region57: #{tpu_custom_call.1} parent=1 // pred_fallthru
      _
    // Predicated region
    $region58: #{tpu_custom_call.1} parent=1 // pred_check
      _
    $region59: #{tpu_custom_call.1} parent=1 // pred_check_branch
      %1005 = sbr.rel (0) target = $region61
    $region60: #{tpu_custom_call.1} parent=1 // pred_region
      %1006 = dma.done [#allocation4], 32
    $region61: #{tpu_custom_call.1} parent=1 // pred_fallthru
      _
    %1007 = vsyncpa [#allocation3], 1
    %1008 = vsyncpa [#allocation6], 1
    %1009 = vsyncpa [#allocation4], 1

</llo_original>
